<compile_context>
chip_gen: v7x
topology: tpu7x:2x2x1
jax: 0.10.0
libtpu: 0.0.40
codegen_flags: <defaults>
</compile_context>

<pallas_src>
import functools

import jax
import jax.numpy as jnp
from jax import lax
from jax.experimental import pallas as pl
from jax.experimental.pallas import tpu as pltpu

BN_EPS = 1e-5
LANE = 128
SUBLANE = 8


def _round_up(x, m):
    return (x + m - 1) // m * m


def _pad2(a, rows, cols):
    return jnp.pad(a, ((0, rows - a.shape[0]), (0, cols - a.shape[1])))


# --------------------------- fused Pallas kernel ----------------------------
def _fused_graph_cnn_kernel(n_true, num_layers,
                            adj_ref, x_ref, gp_ref,
                            w1_ref, b1_ref, g1_ref, be1_ref,
                            w2_ref, b2_ref, g2_ref, be2_ref,
                            pooled_out_ref, h_out_ref):
    n_pad = x_ref.shape[0]
    inv_n = jnp.float32(1.0 / n_true)

    # Node mask: padded node rows must not contaminate the BatchNorm statistics.
    row_id = lax.broadcasted_iota(jnp.int32, (n_pad, 1), 0)
    mask = (row_id < n_true).astype(jnp.float32)

    # bf16 adjacency (0/1 entries are exact) is used as an MXU operand directly.
    adj = adj_ref[...]

    def batch_norm(z, gamma, beta):
        # One-pass masked stats: both reductions are independent (no mu -> var chain).
        zm = z * mask
        s1 = jnp.sum(zm, axis=0, keepdims=True)
        s2 = jnp.sum(zm * z, axis=0, keepdims=True)
        mu = s1 * inv_n
        var = jnp.maximum(s2 * inv_n - mu * mu, 0.0)
        # Fused per-column scale/shift apply (2 full-tile VALU passes).
        scale = gamma * lax.rsqrt(var + BN_EPS)
        shift = beta - mu * scale
        return z * scale + shift

    h = x_ref[...]
    for l in range(num_layers):  # static unroll (2 conv layers for L2D default)
        # neighbor 'sum' pooling (learn_eps=False path): pooled = Adj @ h
        # bf16 x bf16 operands, f32 accumulation -> single MXU pass.
        pooled = jnp.dot(adj, h.astype(jnp.bfloat16),
                         preferred_element_type=jnp.float32)

        # MLP hidden layer: Linear -> BatchNorm1d (batch stats) -> ReLU
        z = jnp.dot(pooled, w1_ref[l], preferred_element_type=jnp.float32) + b1_ref[l]
        z = jnp.maximum(batch_norm(z, g1_ref[l], be1_ref[l]), 0.0)

        # MLP output layer: Linear
        z = jnp.dot(z, w2_ref[l], preferred_element_type=jnp.float32) + b2_ref[l]

        # GraphCNN outer BatchNorm1d + ReLU; zero padded node rows.
        h = jnp.maximum(batch_norm(z, g2_ref[l], be2_ref[l]), 0.0) * mask

    h_out_ref[...] = h
    pooled_out_ref[...] = jnp.dot(gp_ref[...], h, preferred_element_type=jnp.float32)


# --------------------------------- wrapper ----------------------------------
def graph_cnn_forward(x, graph_pool, adj, params):
    """Pallas GraphCNN forward. Returns (pooled_h, h_nodes)."""
    n, in_dim = x.shape
    g = graph_pool.shape[0]
    hidden = params[0][0].shape[1]
    num_layers = len(params)

    d_pad = _round_up(max(in_dim, hidden), LANE)   # lane-dense feature dim
    n_pad = _round_up(n, LANE)                     # lane-dense Adj contraction dim
    g_pad = _round_up(g, SUBLANE)

    x_p = _pad2(x, n_pad, d_pad)
    adj_p = _pad2(adj, n_pad, n_pad).astype(jnp.bfloat16)   # 0/1 -> exact in bf16
    gp_p = _pad2(graph_pool, g_pad, n_pad)

    pad_w = lambda w: _pad2(w, d_pad, d_pad)
    pad_v = lambda v: jnp.pad(v, ((0, 0), (0, d_pad - v.shape[1])))

    w1 = jnp.stack([pad_w(p[0]) for p in params])
    b1 = jnp.stack([pad_v(p[1]) for p in params])
    g1 = jnp.stack([pad_v(p[2]) for p in params])
    be1 = jnp.stack([pad_v(p[3]) for p in params])
    w2 = jnp.stack([pad_w(p[4]) for p in params])
    b2 = jnp.stack([pad_v(p[5]) for p in params])
    g2 = jnp.stack([pad_v(p[6]) for p in params])
    be2 = jnp.stack([pad_v(p[7]) for p in params])

    args = (adj_p, x_p, gp_p, w1, b1, g1, be1, w2, b2, g2, be2)

    in_bytes = sum(int(a.size) * a.dtype.itemsize for a in args)
    out_bytes = (g_pad * d_pad + n_pad * d_pad) * 4
    flops = (num_layers * (2 * n_pad * n_pad * d_pad + 2 * 2 * n_pad * d_pad * d_pad)
             + 2 * g_pad * n_pad * d_pad)
    cost = pl.CostEstimate(flops=flops,
                           transcendentals=4 * num_layers * d_pad,   # rsqrt rows
                           bytes_accessed=in_bytes + out_bytes)

    # Scoped-VMEM headroom (everything resident + margin), capped at v7x's 64 MiB.
    vmem_limit = int(min(max(2 * (in_bytes + out_bytes) + (2 << 20), 8 << 20), 64 << 20))

    vmem = pl.BlockSpec(memory_space=pltpu.MemorySpace.VMEM)
    kernel = functools.partial(_fused_graph_cnn_kernel, n, num_layers)
    pooled_p, h_p = pl.pallas_call(
        kernel,
        out_shape=(jax.ShapeDtypeStruct((g_pad, d_pad), jnp.float32),
                   jax.ShapeDtypeStruct((n_pad, d_pad), jnp.float32)),
        in_specs=[vmem] * len(args),
        out_specs=(vmem, vmem),
        compiler_params=pltpu.CompilerParams(vmem_limit_bytes=vmem_limit),
        cost_estimate=cost,
    )(*args)

    return pooled_p[:g, :hidden], h_p[:n, :hidden]


# ---------------- reference (pure JAX) for correctness check ----------------
def _dot_hi(a, b):
    return jnp.dot(a, b, precision=jax.lax.Precision.HIGHEST,
                   preferred_element_type=jnp.float32)


def _bn(z, g, b):
    mu = jnp.mean(z, axis=0, keepdims=True)
    var = jnp.mean((z - mu) ** 2, axis=0, keepdims=True)
    return (z - mu) * jax.lax.rsqrt(var + BN_EPS) * g + b


def graph_cnn_ref(x, graph_pool, adj, params, mixed=False):
    """mixed=True mirrors the kernel's bf16 Adj@h operands (f32 accumulation)."""
    h = x
    a = adj.astype(jnp.bfloat16) if mixed else adj
    for (w1, b1, g1, be1, w2, b2, g2, be2) in params:
        hh = h.astype(jnp.bfloat16) if mixed else h
        pooled = jnp.dot(a, hh, preferred_element_type=jnp.float32)
        z = jnp.maximum(_bn(_dot_hi(pooled, w1) + b1, g1, be1), 0.0)
        z = _dot_hi(z, w2) + b2
        h = jnp.maximum(_bn(z, g2, be2), 0.0)
    return _dot_hi(graph_pool, h), h


# ---------------- deterministic parameter init (PyTorch-like) ---------------
def init_params(key, num_layers, input_dim, hidden_dim):
    params = []
    for layer in range(num_layers - 1):
        in_dim = input_dim if layer == 0 else hidden_dim
        key, k1, k2, k3, k4 = jax.random.split(key, 5)
        lim1 = 1.0 / jnp.sqrt(in_dim)
        lim2 = 1.0 / jnp.sqrt(hidden_dim)
        w1 = jax.random.uniform(k1, (in_dim, hidden_dim), jnp.float32, -lim1, lim1)
        b1 = jax.random.uniform(k2, (1, hidden_dim), jnp.float32, -lim1, lim1)
        w2 = jax.random.uniform(k3, (hidden_dim, hidden_dim), jnp.float32, -lim2, lim2)
        b2 = jax.random.uniform(k4, (1, hidden_dim), jnp.float32, -lim2, lim2)
        g1 = jnp.ones((1, hidden_dim), jnp.float32)    # MLP BatchNorm1d gamma
        be1 = jnp.zeros((1, hidden_dim), jnp.float32)  # MLP BatchNorm1d beta
        g2 = jnp.ones((1, hidden_dim), jnp.float32)    # outer BatchNorm1d gamma
        be2 = jnp.zeros((1, hidden_dim), jnp.float32)  # outer BatchNorm1d beta
        params.append((w1, b1, g1, be1, w2, b2, g2, be2))
    return params


if __name__ == "__main__":
    # Small L2D-ish problem: 2 graphs of 8 nodes each (16 nodes total).
    NUM_LAYERS = 3       # GraphCNN num_layers (INCLUDING input layer) -> 2 conv layers
    INPUT_DIM = 8
    HIDDEN_DIM = 32
    N_NODES = 16
    N_GRAPHS = 2

    key = jax.random.PRNGKey(0)
    key, kx, ka = jax.random.split(key, 3)

    x = jax.random.normal(kx, (N_NODES, INPUT_DIM), jnp.float32)

    # dense symmetric adjacency with self-loops (block-diagonal per graph)
    blk = (jax.random.uniform(ka, (N_NODES // 2, N_NODES // 2)) < 0.4).astype(jnp.float32)
    blk = jnp.clip(blk + blk.T + jnp.eye(N_NODES // 2), 0.0, 1.0)
    adj = jnp.zeros((N_NODES, N_NODES), jnp.float32)
    adj = adj.at[:8, :8].set(blk).at[8:, 8:].set(blk)

    # graph_pool: average-pool nodes of each graph (dense stand-in for sparse mm)
    gp = jnp.zeros((N_GRAPHS, N_NODES), jnp.float32)
    gp = gp.at[0, :8].set(1.0 / 8.0).at[1, 8:].set(1.0 / 8.0)

    params = init_params(key, NUM_LAYERS, INPUT_DIM, HIDDEN_DIM)

    pooled_h, h_nodes = graph_cnn_forward(x, gp, adj, params)
    jax.block_until_ready((pooled_h, h_nodes))

    # Strict check vs a reference that mirrors the kernel's bf16 Adj@h operands.
    ref_pooled_m, ref_nodes_m = graph_cnn_ref(x, gp, adj, params, mixed=True)
    assert jnp.allclose(pooled_h, ref_pooled_m, atol=2e-4, rtol=2e-4)
    assert jnp.allclose(h_nodes, ref_nodes_m, atol=2e-4, rtol=2e-4)

    # Loose sanity check vs the pure-f32 reference (bf16 node-feature operand
    # in Adj@h introduces ~1e-3 relative error, amplified slightly by BN).
    ref_pooled_f, ref_nodes_f = graph_cnn_ref(x, gp, adj, params, mixed=False)
    assert jnp.allclose(pooled_h, ref_pooled_f, atol=5e-2, rtol=5e-2)
    assert jnp.allclose(h_nodes, ref_nodes_f, atol=5e-2, rtol=5e-2)

    assert pooled_h.shape == (N_GRAPHS, HIDDEN_DIM)
    assert h_nodes.shape == (N_NODES, HIDDEN_DIM)

    print("KERNEL_OK")
</pallas_src>

<mosaic_0001>
module attributes {stable_mosaic.version = 11 : i64} {
  func.func @_fused_graph_cnn_kernel(%arg0: memref<128x128xbf16, #tpu.memory_space<vmem>>, %arg1: memref<128x128xf32, #tpu.memory_space<vmem>>, %arg2: memref<8x128xf32, #tpu.memory_space<vmem>>, %arg3: memref<2x128x128xf32, #tpu.memory_space<vmem>>, %arg4: memref<2x1x128xf32, #tpu.memory_space<vmem>>, %arg5: memref<2x1x128xf32, #tpu.memory_space<vmem>>, %arg6: memref<2x1x128xf32, #tpu.memory_space<vmem>>, %arg7: memref<2x128x128xf32, #tpu.memory_space<vmem>>, %arg8: memref<2x1x128xf32, #tpu.memory_space<vmem>>, %arg9: memref<2x1x128xf32, #tpu.memory_space<vmem>>, %arg10: memref<2x1x128xf32, #tpu.memory_space<vmem>>, %arg11: memref<8x128xf32, #tpu.memory_space<vmem>>, %arg12: memref<128x128xf32, #tpu.memory_space<vmem>>) attributes {dimension_semantics = [], scalar_prefetch = 0 : i64, scratch_operands = 0 : i64, tpu.core_type = #tpu.core_type<tc>} {
    %0 = tpu.iota {dimensions = array<i32: 0>} : vector<128x1xi32>
    %c16_i32 = arith.constant 16 : i32
    %1 = vector.broadcast %c16_i32 : i32 to vector<128x1xi32>
    %2 = arith.cmpi slt, %0, %1 : vector<128x1xi32>
    %3 = arith.extui %2 : vector<128x1xi1> to vector<128x1xi32>
    %4 = arith.sitofp %3 : vector<128x1xi32> to vector<128x1xf32>
    %c0 = arith.constant 0 : index
    %c0_0 = arith.constant 0 : index
    %5 = vector.load %arg0[%c0, %c0_0] : memref<128x128xbf16, #tpu.memory_space<vmem>>, vector<128x128xbf16>
    %c0_1 = arith.constant 0 : index
    %c0_2 = arith.constant 0 : index
    %6 = vector.load %arg1[%c0_1, %c0_2] : memref<128x128xf32, #tpu.memory_space<vmem>>, vector<128x128xf32>
    %7 = arith.truncf %6 : vector<128x128xf32> to vector<128x128xbf16>
    %cst = arith.constant dense<0.000000e+00> : vector<128x128xf32>
    %8 = tpu.matmul %5, %7, %cst {dimension_numbers = #tpu.dot_dimension_numbers<[1], [0], [0], [1], [0, 0, 1, 1], [], []>} : vector<128x128xbf16>, vector<128x128xbf16>, vector<128x128xf32> -> vector<128x128xf32>
    %c0_3 = arith.constant 0 : index
    %c0_4 = arith.constant 0 : index
    %c0_5 = arith.constant 0 : index
    %9 = vector.load %arg3[%c0_3, %c0_4, %c0_5] : memref<2x128x128xf32, #tpu.memory_space<vmem>>, vector<1x128x128xf32>
    %10 = vector.shape_cast %9 : vector<1x128x128xf32> to vector<128x128xf32>
    %cst_6 = arith.constant dense<0.000000e+00> : vector<128x128xf32>
    %11 = tpu.matmul %8, %10, %cst_6 {dimension_numbers = #tpu.dot_dimension_numbers<[1], [0], [0], [1], [0, 0, 1, 1], [], []>} : vector<128x128xf32>, vector<128x128xf32>, vector<128x128xf32> -> vector<128x128xf32>
    %c0_7 = arith.constant 0 : index
    %c0_8 = arith.constant 0 : index
    %c0_9 = arith.constant 0 : index
    %12 = vector.load %arg4[%c0_7, %c0_8, %c0_9] : memref<2x1x128xf32, #tpu.memory_space<vmem>>, vector<1x1x128xf32>
    %13 = vector.shape_cast %12 : vector<1x1x128xf32> to vector<1x128xf32>
    %14 = vector.broadcast %13 : vector<1x128xf32> to vector<128x128xf32>
    %15 = arith.addf %11, %14 : vector<128x128xf32>
    %c0_10 = arith.constant 0 : index
    %c0_11 = arith.constant 0 : index
    %c0_12 = arith.constant 0 : index
    %16 = vector.load %arg5[%c0_10, %c0_11, %c0_12] : memref<2x1x128xf32, #tpu.memory_space<vmem>>, vector<1x1x128xf32>
    %17 = vector.shape_cast %16 : vector<1x1x128xf32> to vector<1x128xf32>
    %c0_13 = arith.constant 0 : index
    %c0_14 = arith.constant 0 : index
    %c0_15 = arith.constant 0 : index
    %18 = vector.load %arg6[%c0_13, %c0_14, %c0_15] : memref<2x1x128xf32, #tpu.memory_space<vmem>>, vector<1x1x128xf32>
    %19 = vector.shape_cast %18 : vector<1x1x128xf32> to vector<1x128xf32>
    %20 = vector.broadcast %4 : vector<128x1xf32> to vector<128x128xf32>
    %21 = arith.mulf %15, %20 : vector<128x128xf32>
    %cst_16 = arith.constant dense<0.000000e+00> : vector<128xf32>
    %22 = vector.multi_reduction <add>, %21, %cst_16 [0] : vector<128x128xf32> to vector<128xf32>
    %23 = vector.shape_cast %22 : vector<128xf32> to vector<1x128xf32>
    %24 = arith.mulf %21, %15 : vector<128x128xf32>
    %cst_17 = arith.constant dense<0.000000e+00> : vector<128xf32>
    %25 = vector.multi_reduction <add>, %24, %cst_17 [0] : vector<128x128xf32> to vector<128xf32>
    %26 = vector.shape_cast %25 : vector<128xf32> to vector<1x128xf32>
    %cst_18 = arith.constant 6.250000e-02 : f32
    %27 = vector.broadcast %cst_18 : f32 to vector<1x128xf32>
    %28 = arith.mulf %23, %27 : vector<1x128xf32>
    %cst_19 = arith.constant 6.250000e-02 : f32
    %29 = vector.broadcast %cst_19 : f32 to vector<1x128xf32>
    %30 = arith.mulf %26, %29 : vector<1x128xf32>
    %31 = arith.mulf %28, %28 : vector<1x128xf32>
    %32 = arith.subf %30, %31 : vector<1x128xf32>
    %cst_20 = arith.constant 0.000000e+00 : f32
    %33 = vector.broadcast %cst_20 : f32 to vector<1x128xf32>
    %34 = arith.maximumf %32, %33 : vector<1x128xf32>
    %cst_21 = arith.constant 9.99999974E-6 : f32
    %35 = vector.broadcast %cst_21 : f32 to vector<1x128xf32>
    %36 = arith.addf %34, %35 : vector<1x128xf32>
    %37 = math.rsqrt %36 : vector<1x128xf32>
    %38 = arith.mulf %17, %37 : vector<1x128xf32>
    %39 = arith.mulf %28, %38 : vector<1x128xf32>
    %40 = arith.subf %19, %39 : vector<1x128xf32>
    %41 = vector.broadcast %38 : vector<1x128xf32> to vector<128x128xf32>
    %42 = arith.mulf %15, %41 : vector<128x128xf32>
    %43 = vector.broadcast %40 : vector<1x128xf32> to vector<128x128xf32>
    %44 = arith.addf %42, %43 : vector<128x128xf32>
    %cst_22 = arith.constant 0.000000e+00 : f32
    %45 = vector.broadcast %cst_22 : f32 to vector<128x128xf32>
    %46 = arith.maximumf %44, %45 : vector<128x128xf32>
    %c0_23 = arith.constant 0 : index
    %c0_24 = arith.constant 0 : index
    %c0_25 = arith.constant 0 : index
    %47 = vector.load %arg7[%c0_23, %c0_24, %c0_25] : memref<2x128x128xf32, #tpu.memory_space<vmem>>, vector<1x128x128xf32>
    %48 = vector.shape_cast %47 : vector<1x128x128xf32> to vector<128x128xf32>
    %cst_26 = arith.constant dense<0.000000e+00> : vector<128x128xf32>
    %49 = tpu.matmul %46, %48, %cst_26 {dimension_numbers = #tpu.dot_dimension_numbers<[1], [0], [0], [1], [0, 0, 1, 1], [], []>} : vector<128x128xf32>, vector<128x128xf32>, vector<128x128xf32> -> vector<128x128xf32>
    %c0_27 = arith.constant 0 : index
    %c0_28 = arith.constant 0 : index
    %c0_29 = arith.constant 0 : index
    %50 = vector.load %arg8[%c0_27, %c0_28, %c0_29] : memref<2x1x128xf32, #tpu.memory_space<vmem>>, vector<1x1x128xf32>
    %51 = vector.shape_cast %50 : vector<1x1x128xf32> to vector<1x128xf32>
    %52 = vector.broadcast %51 : vector<1x128xf32> to vector<128x128xf32>
    %53 = arith.addf %49, %52 : vector<128x128xf32>
    %c0_30 = arith.constant 0 : index
    %c0_31 = arith.constant 0 : index
    %c0_32 = arith.constant 0 : index
    %54 = vector.load %arg9[%c0_30, %c0_31, %c0_32] : memref<2x1x128xf32, #tpu.memory_space<vmem>>, vector<1x1x128xf32>
    %55 = vector.shape_cast %54 : vector<1x1x128xf32> to vector<1x128xf32>
    %c0_33 = arith.constant 0 : index
    %c0_34 = arith.constant 0 : index
    %c0_35 = arith.constant 0 : index
    %56 = vector.load %arg10[%c0_33, %c0_34, %c0_35] : memref<2x1x128xf32, #tpu.memory_space<vmem>>, vector<1x1x128xf32>
    %57 = vector.shape_cast %56 : vector<1x1x128xf32> to vector<1x128xf32>
    %58 = vector.broadcast %4 : vector<128x1xf32> to vector<128x128xf32>
    %59 = arith.mulf %53, %58 : vector<128x128xf32>
    %cst_36 = arith.constant dense<0.000000e+00> : vector<128xf32>
    %60 = vector.multi_reduction <add>, %59, %cst_36 [0] : vector<128x128xf32> to vector<128xf32>
    %61 = vector.shape_cast %60 : vector<128xf32> to vector<1x128xf32>
    %62 = arith.mulf %59, %53 : vector<128x128xf32>
    %cst_37 = arith.constant dense<0.000000e+00> : vector<128xf32>
    %63 = vector.multi_reduction <add>, %62, %cst_37 [0] : vector<128x128xf32> to vector<128xf32>
    %64 = vector.shape_cast %63 : vector<128xf32> to vector<1x128xf32>
    %cst_38 = arith.constant 6.250000e-02 : f32
    %65 = vector.broadcast %cst_38 : f32 to vector<1x128xf32>
    %66 = arith.mulf %61, %65 : vector<1x128xf32>
    %cst_39 = arith.constant 6.250000e-02 : f32
    %67 = vector.broadcast %cst_39 : f32 to vector<1x128xf32>
    %68 = arith.mulf %64, %67 : vector<1x128xf32>
    %69 = arith.mulf %66, %66 : vector<1x128xf32>
    %70 = arith.subf %68, %69 : vector<1x128xf32>
    %cst_40 = arith.constant 0.000000e+00 : f32
    %71 = vector.broadcast %cst_40 : f32 to vector<1x128xf32>
    %72 = arith.maximumf %70, %71 : vector<1x128xf32>
    %cst_41 = arith.constant 9.99999974E-6 : f32
    %73 = vector.broadcast %cst_41 : f32 to vector<1x128xf32>
    %74 = arith.addf %72, %73 : vector<1x128xf32>
    %75 = math.rsqrt %74 : vector<1x128xf32>
    %76 = arith.mulf %55, %75 : vector<1x128xf32>
    %77 = arith.mulf %66, %76 : vector<1x128xf32>
    %78 = arith.subf %57, %77 : vector<1x128xf32>
    %79 = vector.broadcast %76 : vector<1x128xf32> to vector<128x128xf32>
    %80 = arith.mulf %53, %79 : vector<128x128xf32>
    %81 = vector.broadcast %78 : vector<1x128xf32> to vector<128x128xf32>
    %82 = arith.addf %80, %81 : vector<128x128xf32>
    %cst_42 = arith.constant 0.000000e+00 : f32
    %83 = vector.broadcast %cst_42 : f32 to vector<128x128xf32>
    %84 = arith.maximumf %82, %83 : vector<128x128xf32>
    %85 = vector.broadcast %4 : vector<128x1xf32> to vector<128x128xf32>
    %86 = arith.mulf %84, %85 : vector<128x128xf32>
    %87 = arith.truncf %86 : vector<128x128xf32> to vector<128x128xbf16>
    %cst_43 = arith.constant dense<0.000000e+00> : vector<128x128xf32>
    %88 = tpu.matmul %5, %87, %cst_43 {dimension_numbers = #tpu.dot_dimension_numbers<[1], [0], [0], [1], [0, 0, 1, 1], [], []>} : vector<128x128xbf16>, vector<128x128xbf16>, vector<128x128xf32> -> vector<128x128xf32>
    %c1 = arith.constant 1 : index
    %c0_44 = arith.constant 0 : index
    %c0_45 = arith.constant 0 : index
    %89 = vector.load %arg3[%c1, %c0_44, %c0_45] : memref<2x128x128xf32, #tpu.memory_space<vmem>>, vector<1x128x128xf32>
    %90 = vector.shape_cast %89 : vector<1x128x128xf32> to vector<128x128xf32>
    %cst_46 = arith.constant dense<0.000000e+00> : vector<128x128xf32>
    %91 = tpu.matmul %88, %90, %cst_46 {dimension_numbers = #tpu.dot_dimension_numbers<[1], [0], [0], [1], [0, 0, 1, 1], [], []>} : vector<128x128xf32>, vector<128x128xf32>, vector<128x128xf32> -> vector<128x128xf32>
    %c1_47 = arith.constant 1 : index
    %c0_48 = arith.constant 0 : index
    %c0_49 = arith.constant 0 : index
    %92 = vector.load %arg4[%c1_47, %c0_48, %c0_49] : memref<2x1x128xf32, #tpu.memory_space<vmem>>, vector<1x1x128xf32>
    %93 = vector.shape_cast %92 : vector<1x1x128xf32> to vector<1x128xf32>
    %94 = vector.broadcast %93 : vector<1x128xf32> to vector<128x128xf32>
    %95 = arith.addf %91, %94 : vector<128x128xf32>
    %c1_50 = arith.constant 1 : index
    %c0_51 = arith.constant 0 : index
    %c0_52 = arith.constant 0 : index
    %96 = vector.load %arg5[%c1_50, %c0_51, %c0_52] : memref<2x1x128xf32, #tpu.memory_space<vmem>>, vector<1x1x128xf32>
    %97 = vector.shape_cast %96 : vector<1x1x128xf32> to vector<1x128xf32>
    %c1_53 = arith.constant 1 : index
    %c0_54 = arith.constant 0 : index
    %c0_55 = arith.constant 0 : index
    %98 = vector.load %arg6[%c1_53, %c0_54, %c0_55] : memref<2x1x128xf32, #tpu.memory_space<vmem>>, vector<1x1x128xf32>
    %99 = vector.shape_cast %98 : vector<1x1x128xf32> to vector<1x128xf32>
    %100 = vector.broadcast %4 : vector<128x1xf32> to vector<128x128xf32>
    %101 = arith.mulf %95, %100 : vector<128x128xf32>
    %cst_56 = arith.constant dense<0.000000e+00> : vector<128xf32>
    %102 = vector.multi_reduction <add>, %101, %cst_56 [0] : vector<128x128xf32> to vector<128xf32>
    %103 = vector.shape_cast %102 : vector<128xf32> to vector<1x128xf32>
    %104 = arith.mulf %101, %95 : vector<128x128xf32>
    %cst_57 = arith.constant dense<0.000000e+00> : vector<128xf32>
    %105 = vector.multi_reduction <add>, %104, %cst_57 [0] : vector<128x128xf32> to vector<128xf32>
    %106 = vector.shape_cast %105 : vector<128xf32> to vector<1x128xf32>
    %cst_58 = arith.constant 6.250000e-02 : f32
    %107 = vector.broadcast %cst_58 : f32 to vector<1x128xf32>
    %108 = arith.mulf %103, %107 : vector<1x128xf32>
    %cst_59 = arith.constant 6.250000e-02 : f32
    %109 = vector.broadcast %cst_59 : f32 to vector<1x128xf32>
    %110 = arith.mulf %106, %109 : vector<1x128xf32>
    %111 = arith.mulf %108, %108 : vector<1x128xf32>
    %112 = arith.subf %110, %111 : vector<1x128xf32>
    %cst_60 = arith.constant 0.000000e+00 : f32
    %113 = vector.broadcast %cst_60 : f32 to vector<1x128xf32>
    %114 = arith.maximumf %112, %113 : vector<1x128xf32>
    %cst_61 = arith.constant 9.99999974E-6 : f32
    %115 = vector.broadcast %cst_61 : f32 to vector<1x128xf32>
    %116 = arith.addf %114, %115 : vector<1x128xf32>
    %117 = math.rsqrt %116 : vector<1x128xf32>
    %118 = arith.mulf %97, %117 : vector<1x128xf32>
    %119 = arith.mulf %108, %118 : vector<1x128xf32>
    %120 = arith.subf %99, %119 : vector<1x128xf32>
    %121 = vector.broadcast %118 : vector<1x128xf32> to vector<128x128xf32>
    %122 = arith.mulf %95, %121 : vector<128x128xf32>
    %123 = vector.broadcast %120 : vector<1x128xf32> to vector<128x128xf32>
    %124 = arith.addf %122, %123 : vector<128x128xf32>
    %cst_62 = arith.constant 0.000000e+00 : f32
    %125 = vector.broadcast %cst_62 : f32 to vector<128x128xf32>
    %126 = arith.maximumf %124, %125 : vector<128x128xf32>
    %c1_63 = arith.constant 1 : index
    %c0_64 = arith.constant 0 : index
    %c0_65 = arith.constant 0 : index
    %127 = vector.load %arg7[%c1_63, %c0_64, %c0_65] : memref<2x128x128xf32, #tpu.memory_space<vmem>>, vector<1x128x128xf32>
    %128 = vector.shape_cast %127 : vector<1x128x128xf32> to vector<128x128xf32>
    %cst_66 = arith.constant dense<0.000000e+00> : vector<128x128xf32>
    %129 = tpu.matmul %126, %128, %cst_66 {dimension_numbers = #tpu.dot_dimension_numbers<[1], [0], [0], [1], [0, 0, 1, 1], [], []>} : vector<128x128xf32>, vector<128x128xf32>, vector<128x128xf32> -> vector<128x128xf32>
    %c1_67 = arith.constant 1 : index
    %c0_68 = arith.constant 0 : index
    %c0_69 = arith.constant 0 : index
    %130 = vector.load %arg8[%c1_67, %c0_68, %c0_69] : memref<2x1x128xf32, #tpu.memory_space<vmem>>, vector<1x1x128xf32>
    %131 = vector.shape_cast %130 : vector<1x1x128xf32> to vector<1x128xf32>
    %132 = vector.broadcast %131 : vector<1x128xf32> to vector<128x128xf32>
    %133 = arith.addf %129, %132 : vector<128x128xf32>
    %c1_70 = arith.constant 1 : index
    %c0_71 = arith.constant 0 : index
    %c0_72 = arith.constant 0 : index
    %134 = vector.load %arg9[%c1_70, %c0_71, %c0_72] : memref<2x1x128xf32, #tpu.memory_space<vmem>>, vector<1x1x128xf32>
    %135 = vector.shape_cast %134 : vector<1x1x128xf32> to vector<1x128xf32>
    %c1_73 = arith.constant 1 : index
    %c0_74 = arith.constant 0 : index
    %c0_75 = arith.constant 0 : index
    %136 = vector.load %arg10[%c1_73, %c0_74, %c0_75] : memref<2x1x128xf32, #tpu.memory_space<vmem>>, vector<1x1x128xf32>
    %137 = vector.shape_cast %136 : vector<1x1x128xf32> to vector<1x128xf32>
    %138 = vector.broadcast %4 : vector<128x1xf32> to vector<128x128xf32>
    %139 = arith.mulf %133, %138 : vector<128x128xf32>
    %cst_76 = arith.constant dense<0.000000e+00> : vector<128xf32>
    %140 = vector.multi_reduction <add>, %139, %cst_76 [0] : vector<128x128xf32> to vector<128xf32>
    %141 = vector.shape_cast %140 : vector<128xf32> to vector<1x128xf32>
    %142 = arith.mulf %139, %133 : vector<128x128xf32>
    %cst_77 = arith.constant dense<0.000000e+00> : vector<128xf32>
    %143 = vector.multi_reduction <add>, %142, %cst_77 [0] : vector<128x128xf32> to vector<128xf32>
    %144 = vector.shape_cast %143 : vector<128xf32> to vector<1x128xf32>
    %cst_78 = arith.constant 6.250000e-02 : f32
    %145 = vector.broadcast %cst_78 : f32 to vector<1x128xf32>
    %146 = arith.mulf %141, %145 : vector<1x128xf32>
    %cst_79 = arith.constant 6.250000e-02 : f32
    %147 = vector.broadcast %cst_79 : f32 to vector<1x128xf32>
    %148 = arith.mulf %144, %147 : vector<1x128xf32>
    %149 = arith.mulf %146, %146 : vector<1x128xf32>
    %150 = arith.subf %148, %149 : vector<1x128xf32>
    %cst_80 = arith.constant 0.000000e+00 : f32
    %151 = vector.broadcast %cst_80 : f32 to vector<1x128xf32>
    %152 = arith.maximumf %150, %151 : vector<1x128xf32>
    %cst_81 = arith.constant 9.99999974E-6 : f32
    %153 = vector.broadcast %cst_81 : f32 to vector<1x128xf32>
    %154 = arith.addf %152, %153 : vector<1x128xf32>
    %155 = math.rsqrt %154 : vector<1x128xf32>
    %156 = arith.mulf %135, %155 : vector<1x128xf32>
    %157 = arith.mulf %146, %156 : vector<1x128xf32>
    %158 = arith.subf %137, %157 : vector<1x128xf32>
    %159 = vector.broadcast %156 : vector<1x128xf32> to vector<128x128xf32>
    %160 = arith.mulf %133, %159 : vector<128x128xf32>
    %161 = vector.broadcast %158 : vector<1x128xf32> to vector<128x128xf32>
    %162 = arith.addf %160, %161 : vector<128x128xf32>
    %cst_82 = arith.constant 0.000000e+00 : f32
    %163 = vector.broadcast %cst_82 : f32 to vector<128x128xf32>
    %164 = arith.maximumf %162, %163 : vector<128x128xf32>
    %165 = vector.broadcast %4 : vector<128x1xf32> to vector<128x128xf32>
    %166 = arith.mulf %164, %165 : vector<128x128xf32>
    %c0_83 = arith.constant 0 : index
    %c0_84 = arith.constant 0 : index
    %167 = vector.load %arg12[%c0_83, %c0_84] : memref<128x128xf32, #tpu.memory_space<vmem>>, vector<128x128xf32>
    tpu.vector_store %arg12[%c0_83, %c0_84], %166 {strides = array<i32>} : memref<128x128xf32, #tpu.memory_space<vmem>>, vector<128x128xf32>,
    %c0_85 = arith.constant 0 : index
    %c0_86 = arith.constant 0 : index
    %168 = vector.load %arg2[%c0_85, %c0_86] : memref<8x128xf32, #tpu.memory_space<vmem>>, vector<8x128xf32>
    %cst_87 = arith.constant dense<0.000000e+00> : vector<8x128xf32>
    %169 = tpu.matmul %168, %166, %cst_87 {dimension_numbers = #tpu.dot_dimension_numbers<[1], [0], [0], [1], [0, 0, 1, 1], [], []>} : vector<8x128xf32>, vector<128x128xf32>, vector<8x128xf32> -> vector<8x128xf32>
    %c0_88 = arith.constant 0 : index
    %c0_89 = arith.constant 0 : index
    %170 = vector.load %arg11[%c0_88, %c0_89] : memref<8x128xf32, #tpu.memory_space<vmem>>, vector<8x128xf32>
    tpu.vector_store %arg11[%c0_88, %c0_89], %169 {strides = array<i32>} : memref<8x128xf32, #tpu.memory_space<vmem>>, vector<8x128xf32>,
    return
  }
}

</mosaic_0001>

<llo_original>
// kernel: tpu_custom_call.1
$region0: #{tpu_custom_call.1}
  #allocation0 [shape = 'u32[]', space=smem, size = 0x4, offset = 0x4, fixed_abs, tag = 'smem constant byte address 0x4 - core index']
  #allocation1 [shape = 'u32[144,128]{1,0:T(1,128)}', space=vmem, size = 0x12000, scoped, tag = 'internal scratch']
  %s0 = inlined_call_operand.hbm [shape: bf16[128,128], index: 0, kind: input, shape index: {}]
  %s1 = inlined_call_operand.hbm [shape: f32[128,128], index: 1, kind: input, shape index: {}]
  %s2 = inlined_call_operand.hbm [shape: f32[8,128], index: 2, kind: input, shape index: {}]
  %s3 = inlined_call_operand.hbm [shape: f32[2,128,128], index: 3, kind: input, shape index: {}]
  %s4 = inlined_call_operand.vmem [shape: f32[2,1,128], index: 4, kind: input, shape index: {}]
  %s5 = inlined_call_operand.vmem [shape: f32[2,1,128], index: 5, kind: input, shape index: {}]
  %s6 = inlined_call_operand.vmem [shape: f32[2,1,128], index: 6, kind: input, shape index: {}]
  %s7 = inlined_call_operand.hbm [shape: f32[2,128,128], index: 7, kind: input, shape index: {}]
  %s8 = inlined_call_operand.vmem [shape: f32[2,1,128], index: 8, kind: input, shape index: {}]
  %s9 = inlined_call_operand.vmem [shape: f32[2,1,128], index: 9, kind: input, shape index: {}]
  %s10 = inlined_call_operand.vmem [shape: f32[2,1,128], index: 10, kind: input, shape index: {}]
  %s11 = inlined_call_operand.hbm [shape: f32[8,128], index: 11, kind: output, shape index: {0}]
  %s12 = inlined_call_operand.hbm [shape: f32[128,128], index: 12, kind: output, shape index: {1}]
  %13 = xla_tuple %s11, %s12
  %s14 = sld [smem:[#allocation0]]
  $region82: #{tpu_custom_call.1} parent=0
    _
  %s16 = ssub.s32 1, %s14
  %s17 = scalar_select 0, %s16, %s14
  $region1: #{tpu_custom_call.1} parent=0
    #allocation2 [shape = 'u8[32768]{0}', space=vmem, size = 0x8000, scoped, tag = 'input window, operand 0, single buffered']
    #allocation3 [shape = 's32[1]{0}', space=sflag, size = 0x4, scoped, tag = 'scoped memory for tpu_custom_call.1']
    #allocation4 [shape = 's32[1]{0}', space=sflag, size = 0x4, scoped, tag = 'scoped memory for tpu_custom_call.1']
    #allocation5 [shape = 'u8[65536]{0}', space=vmem, size = 0x10000, scoped, tag = 'input window, operand 1, single buffered']
    #allocation6 [shape = 's32[1]{0}', space=sflag, size = 0x4, scoped, tag = 'scoped memory for tpu_custom_call.1']
    #allocation7 [shape = 'u8[4096]{0}', space=vmem, size = 0x1000, scoped, tag = 'input window, operand 2, single buffered']
    #allocation8 [shape = 'u8[131072]{0}', space=vmem, size = 0x20000, scoped, tag = 'input window, operand 3, single buffered']
    #allocation9 [shape = 's32[1]{0}', space=sflag, size = 0x4, scoped, tag = 'scoped memory for tpu_custom_call.1']
    #allocation10 [shape = 'u8[131072]{0}', space=vmem, size = 0x20000, scoped, tag = 'input window, operand 7, single buffered']
    #allocation11 [shape = 'u8[4096]{0}', space=vmem, size = 0x1000, scoped, tag = 'output window, operand 0, single buffered']
    #allocation12 [shape = 'u8[65536]{0}', space=vmem, size = 0x10000, scoped, tag = 'output window, operand 1, single buffered']
    #allocation13 [shape = 's32[1]{0}', space=sflag, size = 0x4, scoped, tag = 'scoped memory for tpu_custom_call.1']
    %18 = vsyncpa [#allocation3], 0
    %19 = vsyncpa [#allocation6], 0
    %20 = vsyncpa [#allocation9], 0
    %21 = vsyncpa [#allocation4], 0
    %22 = vsyncpa [#allocation13], 0
    // Predicated region
    $region2: #{tpu_custom_call.1} parent=1 // pred_check
      _
    $region3: #{tpu_custom_call.1} parent=1 // pred_check_branch
      %24 = sbr.rel (0) target = $region5
    $region4: #{tpu_custom_call.1} parent=1 // pred_region
      %s26 = ssub.s32 1024, 1024
      %27 = vsyncadd [#allocation3], %s26
      %s28 = sshll.u32 [#allocation2], 4
      %s29 = int_to_ptr.vmem [resolvable:$true] %s28
      %34 = dma.hbm_to_vmem [thread:$0]  %s0, 1024, %s29, [#allocation3], 64, 64, 4
    $region5: #{tpu_custom_call.1} parent=1 // pred_fallthru
      _
    // Predicated region
    $region6: #{tpu_custom_call.1} parent=1 // pred_check
      _
    $region7: #{tpu_custom_call.1} parent=1 // pred_check_branch
      %36 = sbr.rel (0) target = $region9
    $region8: #{tpu_custom_call.1} parent=1 // pred_region
      %s38 = ssub.s32 2048, 2048
      %39 = vsyncadd [#allocation6], %s38
      %s40 = sshll.u32 [#allocation5], 4
      %s41 = int_to_ptr.vmem [resolvable:$true] %s40
      %46 = dma.hbm_to_vmem [thread:$0]  %s1, 2048, %s41, [#allocation6], 128, 128, 8
    $region9: #{tpu_custom_call.1} parent=1 // pred_fallthru
      _
    // Predicated region
    $region10: #{tpu_custom_call.1} parent=1 // pred_check
      _
    $region11: #{tpu_custom_call.1} parent=1 // pred_check_branch
      %48 = sbr.rel (0) target = $region13
    $region12: #{tpu_custom_call.1} parent=1 // pred_region
      %s50 = ssub.s32 128, 128
      %51 = vsyncadd [#allocation6], %s50
      %s53 = sshll.u32 [#allocation7], 4
      %s54 = int_to_ptr.vmem [resolvable:$true] %s53
      %56 = dma.hbm_to_vmem [thread:$0]  %s2, 128, %s54, [#allocation6]
    $region13: #{tpu_custom_call.1} parent=1 // pred_fallthru
      _
    // Predicated region
    $region14: #{tpu_custom_call.1} parent=1 // pred_check
      _
    $region15: #{tpu_custom_call.1} parent=1 // pred_check_branch
      %58 = sbr.rel (0) target = $region17
    $region16: #{tpu_custom_call.1} parent=1 // pred_region
      %s60 = ssub.s32 4096, 4096
      %61 = vsyncadd [#allocation9], %s60
      %s62 = sshll.u32 [#allocation8], 4
      %s63 = int_to_ptr.vmem [resolvable:$true] %s62
      %68 = dma.hbm_to_vmem [thread:$0]  %s3, 4096, %s63, [#allocation9], 128, 128, 8
    $region17: #{tpu_custom_call.1} parent=1 // pred_fallthru
      _
    // Predicated region
    $region18: #{tpu_custom_call.1} parent=1 // pred_check
      _
    $region19: #{tpu_custom_call.1} parent=1 // pred_check_branch
      %70 = sbr.rel (0) target = $region21
    $region20: #{tpu_custom_call.1} parent=1 // pred_region
      _
    $region21: #{tpu_custom_call.1} parent=1 // pred_fallthru
      _
    // Predicated region
    $region22: #{tpu_custom_call.1} parent=1 // pred_check
      _
    $region23: #{tpu_custom_call.1} parent=1 // pred_check_branch
      %72 = sbr.rel (0) target = $region25
    $region24: #{tpu_custom_call.1} parent=1 // pred_region
      _
    $region25: #{tpu_custom_call.1} parent=1 // pred_fallthru
      _
    // Predicated region
    $region26: #{tpu_custom_call.1} parent=1 // pred_check
      _
    $region27: #{tpu_custom_call.1} parent=1 // pred_check_branch
      %74 = sbr.rel (0) target = $region29
    $region28: #{tpu_custom_call.1} parent=1 // pred_region
      _
    $region29: #{tpu_custom_call.1} parent=1 // pred_fallthru
      _
    // Predicated region
    $region30: #{tpu_custom_call.1} parent=1 // pred_check
      _
    $region31: #{tpu_custom_call.1} parent=1 // pred_check_branch
      %76 = sbr.rel (0) target = $region33
    $region32: #{tpu_custom_call.1} parent=1 // pred_region
      %s78 = ssub.s32 4096, 4096
      %79 = vsyncadd [#allocation9], %s78
      %s80 = sshll.u32 [#allocation10], 4
      %s81 = int_to_ptr.vmem [resolvable:$true] %s80
      %86 = dma.hbm_to_vmem [thread:$0]  %s7, 4096, %s81, [#allocation9], 128, 128, 8
    $region33: #{tpu_custom_call.1} parent=1 // pred_fallthru
      _
    // Predicated region
    $region34: #{tpu_custom_call.1} parent=1 // pred_check
      _
    $region35: #{tpu_custom_call.1} parent=1 // pred_check_branch
      %88 = sbr.rel (0) target = $region37
    $region36: #{tpu_custom_call.1} parent=1 // pred_region
      _
    $region37: #{tpu_custom_call.1} parent=1 // pred_fallthru
      _
    // Predicated region
    $region38: #{tpu_custom_call.1} parent=1 // pred_check
      _
    $region39: #{tpu_custom_call.1} parent=1 // pred_check_branch
      %90 = sbr.rel (0) target = $region41
    $region40: #{tpu_custom_call.1} parent=1 // pred_region
      _
    $region41: #{tpu_custom_call.1} parent=1 // pred_fallthru
      _
    // Predicated region
    $region42: #{tpu_custom_call.1} parent=1 // pred_check
      _
    $region43: #{tpu_custom_call.1} parent=1 // pred_check_branch
      %92 = sbr.rel (0) target = $region45
    $region44: #{tpu_custom_call.1} parent=1 // pred_region
      _
    $region45: #{tpu_custom_call.1} parent=1 // pred_fallthru
      _
    // Predicated region
    $region46: #{tpu_custom_call.1} parent=1 // pred_check
      _
    $region47: #{tpu_custom_call.1} parent=1 // pred_check_branch
      %94 = sbr.rel (0) target = $region49
    $region48: #{tpu_custom_call.1} parent=1 // pred_region
      %95 = dma.done [#allocation3], 1024
    $region49: #{tpu_custom_call.1} parent=1 // pred_fallthru
      _
    // Predicated region
    $region50: #{tpu_custom_call.1} parent=1 // pred_check
      _
    $region51: #{tpu_custom_call.1} parent=1 // pred_check_branch
      %97 = sbr.rel (0) target = $region53
    $region52: #{tpu_custom_call.1} parent=1 // pred_region
      %98 = dma.done [#allocation6], 2048
    $region53: #{tpu_custom_call.1} parent=1 // pred_fallthru
      _
    // Predicated region
    $region54: #{tpu_custom_call.1} parent=1 // pred_check
      _
    $region55: #{tpu_custom_call.1} parent=1 // pred_check_branch
      %100 = sbr.rel (0) target = $region57
    $region56: #{tpu_custom_call.1} parent=1 // pred_region
      %101 = dma.done [#allocation6], 128
    $region57: #{tpu_custom_call.1} parent=1 // pred_fallthru
      _
    // Predicated region
    $region58: #{tpu_custom_call.1} parent=1 // pred_check
      _
    $region59: #{tpu_custom_call.1} parent=1 // pred_check_branch
      %103 = sbr.rel (0) target = $region61
    $region60: #{tpu_custom_call.1} parent=1 // pred_region
      %104 = dma.done [#allocation9], 4096
    $region61: #{tpu_custom_call.1} parent=1 // pred_fallthru
      _
    // Predicated region
    $region62: #{tpu_custom_call.1} parent=1 // pred_check
      _
    $region63: #{tpu_custom_call.1} parent=1 // pred_check_branch
      %106 = sbr.rel (0) target = $region65
    $region64: #{tpu_custom_call.1} parent=1 // pred_region
      %107 = dma.done [#allocation9], 4096
    $region65: #{tpu_custom_call.1} parent=1 // pred_fallthru
      _
    %v109 = vlaneseq
    %v110 = vshrl.u32 %v109, 7
    %v111 = vadd.s32 %v110, 8
    %v112 = vadd.s32 %v110, 16
    %v113 = vadd.s32 %v110, 24
    %v114 = vadd.s32 %v110, 32
    %v115 = vadd.s32 %v110, 40
    %v116 = vadd.s32 %v110, 48
    %v117 = vadd.s32 %v110, 56
    %v118 = vadd.s32 %v110, 64
    %v119 = vadd.s32 %v110, 72
    %v120 = vadd.s32 %v110, 80
    %v121 = vadd.s32 %v110, 88
    %v122 = vadd.s32 %v110, 96
    %v123 = vadd.s32 %v110, 104
    %v124 = vadd.s32 %v110, 112
    %v125 = vadd.s32 %v110, 120
    %vm126 = vcmp.lt.s32.totalorder %v110, 16
    %vm127 = vcmp.lt.s32.totalorder %v111, 16
    %vm128 = vcmp.lt.s32.totalorder %v112, 16
    %vm129 = vcmp.lt.s32.totalorder %v113, 16
    %vm130 = vcmp.lt.s32.totalorder %v114, 16
    %vm131 = vcmp.lt.s32.totalorder %v115, 16
    %vm132 = vcmp.lt.s32.totalorder %v116, 16
    %vm133 = vcmp.lt.s32.totalorder %v117, 16
    %vm134 = vcmp.lt.s32.totalorder %v118, 16
    %vm135 = vcmp.lt.s32.totalorder %v119, 16
    %vm136 = vcmp.lt.s32.totalorder %v120, 16
    %vm137 = vcmp.lt.s32.totalorder %v121, 16
    %vm138 = vcmp.lt.s32.totalorder %v122, 16
    %vm139 = vcmp.lt.s32.totalorder %v123, 16
    %vm140 = vcmp.lt.s32.totalorder %v124, 16
    %vm141 = vcmp.lt.s32.totalorder %v125, 16
    %v142 = vsel %vm126, 1, 0
    %v143 = vsel %vm127, 1, 0
    %v144 = vsel %vm128, 1, 0
    %v145 = vsel %vm129, 1, 0
    %v146 = vsel %vm130, 1, 0
    %v147 = vsel %vm131, 1, 0
    %v148 = vsel %vm132, 1, 0
    %v149 = vsel %vm133, 1, 0
    %v150 = vsel %vm134, 1, 0
    %v151 = vsel %vm135, 1, 0
    %v152 = vsel %vm136, 1, 0
    %v153 = vsel %vm137, 1, 0
    %v154 = vsel %vm138, 1, 0
    %v155 = vsel %vm139, 1, 0
    %v156 = vsel %vm140, 1, 0
    %v157 = vsel %vm141, 1, 0
    %v158 = vcvt.s32.f32 %v142
    %v159 = vcvt.s32.f32 %v143
    %v160 = vcvt.s32.f32 %v144
    %v161 = vcvt.s32.f32 %v145
    %v162 = vcvt.s32.f32 %v146
    %v163 = vcvt.s32.f32 %v147
    %v164 = vcvt.s32.f32 %v148
    %v165 = vcvt.s32.f32 %v149
    %v166 = vcvt.s32.f32 %v150
    %v167 = vcvt.s32.f32 %v151
    %v168 = vcvt.s32.f32 %v152
    %v169 = vcvt.s32.f32 %v153
    %v170 = vcvt.s32.f32 %v154
    %v171 = vcvt.s32.f32 %v155
    %v172 = vcvt.s32.f32 %v156
    %v173 = vcvt.s32.f32 %v157
    %v174 = vld [vmem:[#allocation2] sm:$0xf]
    %v175 = vld [vmem:[#allocation2 + $0x4] sm:$0xf]
    %v176 = vld [vmem:[#allocation2 + $0x8] sm:$0xf]
    %v177 = vld [vmem:[#allocation2 + $0xc] sm:$0xf]
    %v178 = vld [vmem:[#allocation2 + $0x10] sm:$0xf]
    %v179 = vld [vmem:[#allocation2 + $0x14] sm:$0xf]
    %v180 = vld [vmem:[#allocation2 + $0x18] sm:$0xf]
    %v181 = vld [vmem:[#allocation2 + $0x1c] sm:$0xf]
    %v182 = vld [vmem:[#allocation2 + $0x20] sm:$0xf]
    %v183 = vld [vmem:[#allocation2 + $0x24] sm:$0xf]
    %v184 = vld [vmem:[#allocation2 + $0x28] sm:$0xf]
    %v185 = vld [vmem:[#allocation2 + $0x2c] sm:$0xf]
    %v186 = vld [vmem:[#allocation2 + $0x30] sm:$0xf]
    %v187 = vld [vmem:[#allocation2 + $0x34] sm:$0xf]
    %v188 = vld [vmem:[#allocation2 + $0x38] sm:$0xf]
    %v189 = vld [vmem:[#allocation2 + $0x3c] sm:$0xf]
    %v190 = vld [vmem:[#allocation5] sm:$0xff]
    %v191 = vld [vmem:[#allocation5 + $0x8] sm:$0xff]
    %v192 = vld [vmem:[#allocation5 + $0x10] sm:$0xff]
    %v193 = vld [vmem:[#allocation5 + $0x18] sm:$0xff]
    %v194 = vld [vmem:[#allocation5 + $0x20] sm:$0xff]
    %v195 = vld [vmem:[#allocation5 + $0x28] sm:$0xff]
    %v196 = vld [vmem:[#allocation5 + $0x30] sm:$0xff]
    %v197 = vld [vmem:[#allocation5 + $0x38] sm:$0xff]
    %v198 = vld [vmem:[#allocation5 + $0x40] sm:$0xff]
    %v199 = vld [vmem:[#allocation5 + $0x48] sm:$0xff]
    %v200 = vld [vmem:[#allocation5 + $0x50] sm:$0xff]
    %v201 = vld [vmem:[#allocation5 + $0x58] sm:$0xff]
    %v202 = vld [vmem:[#allocation5 + $0x60] sm:$0xff]
    %v203 = vld [vmem:[#allocation5 + $0x68] sm:$0xff]
    %v204 = vld [vmem:[#allocation5 + $0x70] sm:$0xff]
    %v205 = vld [vmem:[#allocation5 + $0x78] sm:$0xff]
    %v206 = vpack.c.bf16 %v191, %v190
    %v207 = vpack.c.bf16 %v193, %v192
    %v208 = vpack.c.bf16 %v195, %v194
    %v209 = vpack.c.bf16 %v197, %v196
    %v210 = vpack.c.bf16 %v199, %v198
    %v211 = vpack.c.bf16 %v201, %v200
    %v212 = vpack.c.bf16 %v203, %v202
    %v213 = vpack.c.bf16 %v205, %v204
    %v230 = vunpack.c.l.b16 %v174
    %v231 = vunpack.c.l.b16 %v175
    %v232 = vunpack.c.l.b16 %v176
    %v233 = vunpack.c.l.b16 %v177
    %v234 = vunpack.c.l.b16 %v178
    %v235 = vunpack.c.l.b16 %v179
    %v236 = vunpack.c.l.b16 %v180
    %v237 = vunpack.c.l.b16 %v181
    %v238 = vunpack.c.l.b16 %v182
    %v239 = vunpack.c.l.b16 %v183
    %v240 = vunpack.c.l.b16 %v184
    %v241 = vunpack.c.l.b16 %v185
    %v242 = vunpack.c.l.b16 %v186
    %v243 = vunpack.c.l.b16 %v187
    %v244 = vunpack.c.l.b16 %v188
    %v245 = vunpack.c.l.b16 %v189
    %v246 = vpack.c.b16 %v231, %v230
    %v247 = vpack.c.b16 %v233, %v232
    %v248 = vpack.c.b16 %v235, %v234
    %v249 = vpack.c.b16 %v237, %v236
    %v250 = vpack.c.b16 %v239, %v238
    %v251 = vpack.c.b16 %v241, %v240
    %v252 = vpack.c.b16 %v243, %v242
    %v253 = vpack.c.b16 %v245, %v244
    %262 = vmatprep.subr.bf16.mxu0 0
    %263 = vmatpush1.bf16.msra.mxu0 %v206
    %264 = vmatprep.subr.bf16.mxu0 0
    %265 = vmatpush1.bf16.msra.mxu0 %v207
    %266 = vmatprep.subr.bf16.mxu0 0
    %267 = vmatpush1.bf16.msra.mxu0 %v208
    %268 = vmatprep.subr.bf16.mxu0 0
    %269 = vmatpush1.bf16.msra.mxu0 %v209
    %270 = vmatprep.subr.bf16.mxu0 0
    %271 = vmatpush1.bf16.msra.mxu0 %v210
    %272 = vmatprep.subr.bf16.mxu0 0
    %273 = vmatpush1.bf16.msra.mxu0 %v211
    %274 = vmatprep.subr.bf16.mxu0 0
    %275 = vmatpush1.bf16.msra.mxu0 %v212
    %276 = vmatprep.subr.bf16.mxu0 0
    %277 = vmatpush1.bf16.msra.mxu0 %v213
    %278 = vmatprep.subr.bf16.mxu0 0
    %279 = vmatpush1.bf16.msra.mxu0 0
    %280 = vmatprep.subr.bf16.mxu0 0
    %281 = vmatpush1.bf16.msra.mxu0 0
    %282 = vmatprep.subr.bf16.mxu0 0
    %283 = vmatpush1.bf16.msra.mxu0 0
    %284 = vmatprep.subr.bf16.mxu0 0
    %285 = vmatpush1.bf16.msra.mxu0 0
    %286 = vmatprep.subr.bf16.mxu0 0
    %287 = vmatpush1.bf16.msra.mxu0 0
    %288 = vmatprep.subr.bf16.mxu0 0
    %289 = vmatpush1.bf16.msra.mxu0 0
    %290 = vmatprep.subr.bf16.mxu0 0
    %291 = vmatpush1.bf16.msra.mxu0 0
    %292 = vmatprep.subr.bf16.mxu0 0
    %293 = vmatpush1.bf16.msra.mxu0 0
    %294 = vmatprep.mubr.bf16.mxu0 0
    %295 = vmatmul.mubr.bf16.gmra.mrb[0].mxu0 %v246
    %v296 = vpop.f32.mrb[0].mxu0
    %v297 = vadd.f32 0.0, %v296
    %v298 = vpop.f32.mrb[0].mxu0
    %v299 = vpop.f32.mrb[0].mxu0
    %v300 = vadd.f32 0.0, %v299
    %v301 = vpop.f32.mrb[0].mxu0
    %302 = vmatprep.mubr.bf16.mxu0 0
    %303 = vmatmul.mubr.bf16.gmra.mrb[0].mxu0 %v247
    %v304 = vpop.f32.mrb[0].mxu0
    %v305 = vadd.f32 0.0, %v304
    %v306 = vpop.f32.mrb[0].mxu0
    %v307 = vpop.f32.mrb[0].mxu0
    %v308 = vadd.f32 0.0, %v307
    %v309 = vpop.f32.mrb[0].mxu0
    %310 = vmatprep.mubr.bf16.mxu0 0
    %311 = vmatmul.mubr.bf16.gmra.mrb[0].mxu0 %v248
    %v312 = vpop.f32.mrb[0].mxu0
    %v313 = vadd.f32 0.0, %v312
    %v314 = vpop.f32.mrb[0].mxu0
    %v315 = vpop.f32.mrb[0].mxu0
    %v316 = vadd.f32 0.0, %v315
    %v317 = vpop.f32.mrb[0].mxu0
    %318 = vmatprep.mubr.bf16.mxu0 0
    %319 = vmatmul.mubr.bf16.gmra.mrb[0].mxu0 %v249
    %v320 = vpop.f32.mrb[0].mxu0
    %v321 = vadd.f32 0.0, %v320
    %v322 = vpop.f32.mrb[0].mxu0
    %v323 = vpop.f32.mrb[0].mxu0
    %v324 = vadd.f32 0.0, %v323
    %v325 = vpop.f32.mrb[0].mxu0
    %326 = vmatprep.mubr.bf16.mxu0 0
    %327 = vmatmul.mubr.bf16.gmra.mrb[0].mxu0 %v250
    %v328 = vpop.f32.mrb[0].mxu0
    %v329 = vadd.f32 0.0, %v328
    %v330 = vpop.f32.mrb[0].mxu0
    %v331 = vpop.f32.mrb[0].mxu0
    %v332 = vadd.f32 0.0, %v331
    %v333 = vpop.f32.mrb[0].mxu0
    %334 = vmatprep.mubr.bf16.mxu0 0
    %335 = vmatmul.mubr.bf16.gmra.mrb[0].mxu0 %v251
    %v336 = vpop.f32.mrb[0].mxu0
    %v337 = vadd.f32 0.0, %v336
    %v338 = vpop.f32.mrb[0].mxu0
    %v339 = vpop.f32.mrb[0].mxu0
    %v340 = vadd.f32 0.0, %v339
    %v341 = vpop.f32.mrb[0].mxu0
    %342 = vmatprep.mubr.bf16.mxu0 0
    %343 = vmatmul.mubr.bf16.gmra.mrb[0].mxu0 %v252
    %v344 = vpop.f32.mrb[0].mxu0
    %v345 = vadd.f32 0.0, %v344
    %v346 = vpop.f32.mrb[0].mxu0
    %v347 = vpop.f32.mrb[0].mxu0
    %v348 = vadd.f32 0.0, %v347
    %v349 = vpop.f32.mrb[0].mxu0
    %350 = vmatprep.mubr.bf16.mxu0 0
    %351 = vmatmul.mubr.bf16.gmra.mrb[0].mxu0 %v253
    %v352 = vpop.f32.mrb[0].mxu0
    %v353 = vadd.f32 0.0, %v352
    %v354 = vpop.f32.mrb[0].mxu0
    %v355 = vpop.f32.mrb[0].mxu0
    %v356 = vadd.f32 0.0, %v355
    %v357 = vpop.f32.mrb[0].mxu0
    %358 = vdwg.mxu0
    %v359 = vld [vmem:[#allocation8] sm:$0xff]
    %v360 = vld [vmem:[#allocation8 + $0x8] sm:$0xff]
    %v361 = vld [vmem:[#allocation8 + $0x10] sm:$0xff]
    %v362 = vld [vmem:[#allocation8 + $0x18] sm:$0xff]
    %v363 = vld [vmem:[#allocation8 + $0x20] sm:$0xff]
    %v364 = vld [vmem:[#allocation8 + $0x28] sm:$0xff]
    %v365 = vld [vmem:[#allocation8 + $0x30] sm:$0xff]
    %v366 = vld [vmem:[#allocation8 + $0x38] sm:$0xff]
    %v367 = vld [vmem:[#allocation8 + $0x40] sm:$0xff]
    %v368 = vld [vmem:[#allocation8 + $0x48] sm:$0xff]
    %v369 = vld [vmem:[#allocation8 + $0x50] sm:$0xff]
    %v370 = vld [vmem:[#allocation8 + $0x58] sm:$0xff]
    %v371 = vld [vmem:[#allocation8 + $0x60] sm:$0xff]
    %v372 = vld [vmem:[#allocation8 + $0x68] sm:$0xff]
    %v373 = vld [vmem:[#allocation8 + $0x70] sm:$0xff]
    %v374 = vld [vmem:[#allocation8 + $0x78] sm:$0xff]
    %v375 = vld [vmem:[%s4] sm:$0x1]
    %v377 = vlaneseq
    %v378 = vshrl.u32 %v377, 7
    %v379 = vsub.s32 0, %v378
    %v380 = vrot.slane %v375, %v379
    %382 = vmatprep.subr.mxu0 0.0
    %383 = vmatpush1.msra.mxu0 %v359
    %384 = vmatprep.subr.mxu0 0.0
    %385 = vmatpush1.msra.mxu0 %v360
    %386 = vmatprep.subr.mxu0 0.0
    %387 = vmatpush1.msra.mxu0 %v361
    %388 = vmatprep.subr.mxu0 0.0
    %389 = vmatpush1.msra.mxu0 %v362
    %390 = vmatprep.subr.mxu0 0.0
    %391 = vmatpush1.msra.mxu0 %v363
    %392 = vmatprep.subr.mxu0 0.0
    %393 = vmatpush1.msra.mxu0 %v364
    %394 = vmatprep.subr.mxu0 0.0
    %395 = vmatpush1.msra.mxu0 %v365
    %396 = vmatprep.subr.mxu0 0.0
    %397 = vmatpush1.msra.mxu0 %v366
    %398 = vmatprep.subr.mxu0 0.0
    %399 = vmatpush1.msra.mxu0 %v367
    %400 = vmatprep.subr.mxu0 0.0
    %401 = vmatpush1.msra.mxu0 %v368
    %402 = vmatprep.subr.mxu0 0.0
    %403 = vmatpush1.msra.mxu0 %v369
    %404 = vmatprep.subr.mxu0 0.0
    %405 = vmatpush1.msra.mxu0 %v370
    %406 = vmatprep.subr.mxu0 0.0
    %407 = vmatpush1.msra.mxu0 %v371
    %408 = vmatprep.subr.mxu0 0.0
    %409 = vmatpush1.msra.mxu0 %v372
    %410 = vmatprep.subr.mxu0 0.0
    %411 = vmatpush1.msra.mxu0 %v373
    %412 = vmatprep.subr.mxu0 0.0
    %413 = vmatpush1.msra.mxu0 %v374
    %414 = vmatprep.subr.mxu0 0.0
    %415 = vmatpush1.msra.mxu0 0.0
    %416 = vmatprep.subr.mxu0 0.0
    %417 = vmatpush1.msra.mxu0 0.0
    %418 = vmatprep.subr.mxu0 0.0
    %419 = vmatpush1.msra.mxu0 0.0
    %420 = vmatprep.subr.mxu0 0.0
    %421 = vmatpush1.msra.mxu0 0.0
    %422 = vmatprep.subr.mxu0 0.0
    %423 = vmatpush1.msra.mxu0 0.0
    %424 = vmatprep.subr.mxu0 0.0
    %425 = vmatpush1.msra.mxu0 0.0
    %426 = vmatprep.subr.mxu0 0.0
    %427 = vmatpush1.msra.mxu0 0.0
    %428 = vmatprep.subr.mxu0 0.0
    %429 = vmatpush1.msra.mxu0 0.0
    %430 = vmatprep.subr.mxu0 0.0
    %431 = vmatpush1.msra.mxu0 0.0
    %432 = vmatprep.subr.mxu0 0.0
    %433 = vmatpush1.msra.mxu0 0.0
    %434 = vmatprep.subr.mxu0 0.0
    %435 = vmatpush1.msra.mxu0 0.0
    %436 = vmatprep.subr.mxu0 0.0
    %437 = vmatpush1.msra.mxu0 0.0
    %438 = vmatprep.subr.mxu0 0.0
    %439 = vmatpush1.msra.mxu0 0.0
    %440 = vmatprep.subr.mxu0 0.0
    %441 = vmatpush1.msra.mxu0 0.0
    %442 = vmatprep.subr.mxu0 0.0
    %443 = vmatpush1.msra.mxu0 0.0
    %444 = vmatprep.subr.mxu0 0.0
    %445 = vmatpush1.msra.mxu0 0.0
    %446 = vmatprep.mubr.f32.mxu0 0.0
    %447 = vmatmul.mubr.f32.gmra.mrb[0].mxu0 %v297
    %v448 = vpop.f32.mrb[0].mxu0
    %v449 = vadd.f32 %v380, %v448
    %v450 = vpop.f32.mrb[0].mxu0
    %451 = vmatprep.mubr.f32.mxu0 0.0
    %452 = vmatmul.mubr.f32.gmra.mrb[0].mxu0 %v300
    %v453 = vpop.f32.mrb[0].mxu0
    %v454 = vadd.f32 %v380, %v453
    %v455 = vpop.f32.mrb[0].mxu0
    %456 = vmatprep.mubr.f32.mxu0 0.0
    %457 = vmatmul.mubr.f32.gmra.mrb[0].mxu0 %v305
    %v458 = vpop.f32.mrb[0].mxu0
    %v459 = vadd.f32 %v380, %v458
    %v460 = vpop.f32.mrb[0].mxu0
    %461 = vmatprep.mubr.f32.mxu0 0.0
    %462 = vmatmul.mubr.f32.gmra.mrb[0].mxu0 %v308
    %v463 = vpop.f32.mrb[0].mxu0
    %v464 = vadd.f32 %v380, %v463
    %v465 = vpop.f32.mrb[0].mxu0
    %466 = vmatprep.mubr.f32.mxu0 0.0
    %467 = vmatmul.mubr.f32.gmra.mrb[0].mxu0 %v313
    %v468 = vpop.f32.mrb[0].mxu0
    %v469 = vadd.f32 %v380, %v468
    %v470 = vpop.f32.mrb[0].mxu0
    %471 = vmatprep.mubr.f32.mxu0 0.0
    %472 = vmatmul.mubr.f32.gmra.mrb[0].mxu0 %v316
    %v473 = vpop.f32.mrb[0].mxu0
    %v474 = vadd.f32 %v380, %v473
    %v475 = vpop.f32.mrb[0].mxu0
    %476 = vmatprep.mubr.f32.mxu0 0.0
    %477 = vmatmul.mubr.f32.gmra.mrb[0].mxu0 %v321
    %v478 = vpop.f32.mrb[0].mxu0
    %v479 = vadd.f32 %v380, %v478
    %v480 = vpop.f32.mrb[0].mxu0
    %481 = vmatprep.mubr.f32.mxu0 0.0
    %482 = vmatmul.mubr.f32.gmra.mrb[0].mxu0 %v324
    %v483 = vpop.f32.mrb[0].mxu0
    %v484 = vadd.f32 %v380, %v483
    %v485 = vpop.f32.mrb[0].mxu0
    %486 = vmatprep.mubr.f32.mxu0 0.0
    %487 = vmatmul.mubr.f32.gmra.mrb[0].mxu0 %v329
    %v488 = vpop.f32.mrb[0].mxu0
    %v489 = vadd.f32 %v380, %v488
    %v490 = vpop.f32.mrb[0].mxu0
    %491 = vmatprep.mubr.f32.mxu0 0.0
    %492 = vmatmul.mubr.f32.gmra.mrb[0].mxu0 %v332
    %v493 = vpop.f32.mrb[0].mxu0
    %v494 = vadd.f32 %v380, %v493
    %v495 = vpop.f32.mrb[0].mxu0
    %496 = vmatprep.mubr.f32.mxu0 0.0
    %497 = vmatmul.mubr.f32.gmra.mrb[0].mxu0 %v337
    %v498 = vpop.f32.mrb[0].mxu0
    %v499 = vadd.f32 %v380, %v498
    %v500 = vpop.f32.mrb[0].mxu0
    %501 = vmatprep.mubr.f32.mxu0 0.0
    %502 = vmatmul.mubr.f32.gmra.mrb[0].mxu0 %v340
    %v503 = vpop.f32.mrb[0].mxu0
    %v504 = vadd.f32 %v380, %v503
    %v505 = vpop.f32.mrb[0].mxu0
    %506 = vmatprep.mubr.f32.mxu0 0.0
    %507 = vmatmul.mubr.f32.gmra.mrb[0].mxu0 %v345
    %v508 = vpop.f32.mrb[0].mxu0
    %v509 = vadd.f32 %v380, %v508
    %v510 = vpop.f32.mrb[0].mxu0
    %511 = vmatprep.mubr.f32.mxu0 0.0
    %512 = vmatmul.mubr.f32.gmra.mrb[0].mxu0 %v348
    %v513 = vpop.f32.mrb[0].mxu0
    %v514 = vadd.f32 %v380, %v513
    %v515 = vpop.f32.mrb[0].mxu0
    %516 = vmatprep.mubr.f32.mxu0 0.0
    %517 = vmatmul.mubr.f32.gmra.mrb[0].mxu0 %v353
    %v518 = vpop.f32.mrb[0].mxu0
    %v519 = vadd.f32 %v380, %v518
    %v520 = vpop.f32.mrb[0].mxu0
    %521 = vmatprep.mubr.f32.mxu0 0.0
    %522 = vmatmul.mubr.f32.gmra.mrb[0].mxu0 %v356
    %v523 = vpop.f32.mrb[0].mxu0
    %v524 = vadd.f32 %v380, %v523
    %v525 = vpop.f32.mrb[0].mxu0
    %526 = vdwg.mxu0
    %v527 = vld [vmem:[%s5] sm:$0x1]
    %v528 = vld [vmem:[%s6] sm:$0x1]
    %v529 = vmul.f32 %v449, %v158
    %v530 = vmul.f32 %v454, %v159
    %v531 = vmul.f32 %v459, %v160
    %v532 = vmul.f32 %v464, %v161
    %v533 = vmul.f32 %v469, %v162
    %v534 = vmul.f32 %v474, %v163
    %v535 = vmul.f32 %v479, %v164
    %v536 = vmul.f32 %v484, %v165
    %v537 = vmul.f32 %v489, %v166
    %v538 = vmul.f32 %v494, %v167
    %v539 = vmul.f32 %v499, %v168
    %v540 = vmul.f32 %v504, %v169
    %v541 = vmul.f32 %v509, %v170
    %v542 = vmul.f32 %v514, %v171
    %v543 = vmul.f32 %v519, %v172
    %v544 = vmul.f32 %v524, %v173
    %v545 = vadd.f32 %v529, %v530
    %v546 = vadd.f32 %v545, %v531
    %v547 = vadd.f32 %v546, %v532
    %v548 = vadd.f32 %v547, %v533
    %v549 = vadd.f32 %v548, %v534
    %v550 = vadd.f32 %v549, %v535
    %v551 = vadd.f32 %v550, %v536
    %v552 = vadd.f32 %v551, %v537
    %v553 = vadd.f32 %v552, %v538
    %v554 = vadd.f32 %v553, %v539
    %v555 = vadd.f32 %v554, %v540
    %v556 = vadd.f32 %v555, %v541
    %v557 = vadd.f32 %v556, %v542
    %v558 = vadd.f32 %v557, %v543
    %v559 = vadd.f32 %v558, %v544
    %v560 = vrot.slane %v559, 4
    %v561 = vadd.f32 %v559, %v560
    %v562 = vrot.slane %v561, 2
    %v563 = vadd.f32 %v561, %v562
    %v564 = vrot.slane %v563, 1
    %v565 = vadd.f32 %v563, %v564
    %v566 = vmul.f32 %v529, %v449
    %v567 = vmul.f32 %v530, %v454
    %v568 = vmul.f32 %v531, %v459
    %v569 = vmul.f32 %v532, %v464
    %v570 = vmul.f32 %v533, %v469
    %v571 = vmul.f32 %v534, %v474
    %v572 = vmul.f32 %v535, %v479
    %v573 = vmul.f32 %v536, %v484
    %v574 = vmul.f32 %v537, %v489
    %v575 = vmul.f32 %v538, %v494
    %v576 = vmul.f32 %v539, %v499
    %v577 = vmul.f32 %v540, %v504
    %v578 = vmul.f32 %v541, %v509
    %v579 = vmul.f32 %v542, %v514
    %v580 = vmul.f32 %v543, %v519
    %v581 = vmul.f32 %v544, %v524
    %v582 = vadd.f32 %v566, %v567
    %v583 = vadd.f32 %v582, %v568
    %v584 = vadd.f32 %v583, %v569
    %v585 = vadd.f32 %v584, %v570
    %v586 = vadd.f32 %v585, %v571
    %v587 = vadd.f32 %v586, %v572
    %v588 = vadd.f32 %v587, %v573
    %v589 = vadd.f32 %v588, %v574
    %v590 = vadd.f32 %v589, %v575
    %v591 = vadd.f32 %v590, %v576
    %v592 = vadd.f32 %v591, %v577
    %v593 = vadd.f32 %v592, %v578
    %v594 = vadd.f32 %v593, %v579
    %v595 = vadd.f32 %v594, %v580
    %v596 = vadd.f32 %v595, %v581
    %v597 = vrot.slane %v596, 4
    %v598 = vadd.f32 %v596, %v597
    %v599 = vrot.slane %v598, 2
    %v600 = vadd.f32 %v598, %v599
    %v601 = vrot.slane %v600, 1
    %v602 = vadd.f32 %v600, %v601
    %v603 = vmul.f32 %v565, 0.0625
    %v604 = vmul.f32 %v602, 0.0625
    %v605 = vmul.f32 %v603, %v603
    %v606 = vsub.f32 %v604, %v605
    %v607 = vmax.f32 %v606, 0.0
    %v608 = vadd.f32 %v607, 1e-05
    %v609 = vrsqrt.pop %v608
    %v610 = vmul.f32 %v527, %v609
    %v611 = vmul.f32 %v603, %v610
    %v612 = vsub.f32 %v528, %v611
    %v614 = vlaneseq
    %v615 = vshrl.u32 %v614, 7
    %v616 = vsub.s32 0, %v615
    %v617 = vrot.slane %v610, %v616
    %v619 = vmul.f32 %v449, %v617
    %v620 = vmul.f32 %v454, %v617
    %v621 = vmul.f32 %v459, %v617
    %v622 = vmul.f32 %v464, %v617
    %v623 = vmul.f32 %v469, %v617
    %v624 = vmul.f32 %v474, %v617
    %v625 = vmul.f32 %v479, %v617
    %v626 = vmul.f32 %v484, %v617
    %v627 = vmul.f32 %v489, %v617
    %v628 = vmul.f32 %v494, %v617
    %v629 = vmul.f32 %v499, %v617
    %v630 = vmul.f32 %v504, %v617
    %v631 = vmul.f32 %v509, %v617
    %v632 = vmul.f32 %v514, %v617
    %v633 = vmul.f32 %v519, %v617
    %v634 = vmul.f32 %v524, %v617
    %v636 = vlaneseq
    %v637 = vshrl.u32 %v636, 7
    %v638 = vsub.s32 0, %v637
    %v639 = vrot.slane %v612, %v638
    %v641 = vadd.f32 %v619, %v639
    %v642 = vadd.f32 %v620, %v639
    %v643 = vadd.f32 %v621, %v639
    %v644 = vadd.f32 %v622, %v639
    %v645 = vadd.f32 %v623, %v639
    %v646 = vadd.f32 %v624, %v639
    %v647 = vadd.f32 %v625, %v639
    %v648 = vadd.f32 %v626, %v639
    %v649 = vadd.f32 %v627, %v639
    %v650 = vadd.f32 %v628, %v639
    %v651 = vadd.f32 %v629, %v639
    %v652 = vadd.f32 %v630, %v639
    %v653 = vadd.f32 %v631, %v639
    %v654 = vadd.f32 %v632, %v639
    %v655 = vadd.f32 %v633, %v639
    %v656 = vadd.f32 %v634, %v639
    %v657 = vmax.f32 %v641, 0.0
    %v658 = vmax.f32 %v642, 0.0
    %v659 = vmax.f32 %v643, 0.0
    %v660 = vmax.f32 %v644, 0.0
    %v661 = vmax.f32 %v645, 0.0
    %v662 = vmax.f32 %v646, 0.0
    %v663 = vmax.f32 %v647, 0.0
    %v664 = vmax.f32 %v648, 0.0
    %v665 = vmax.f32 %v649, 0.0
    %v666 = vmax.f32 %v650, 0.0
    %v667 = vmax.f32 %v651, 0.0
    %v668 = vmax.f32 %v652, 0.0
    %v669 = vmax.f32 %v653, 0.0
    %v670 = vmax.f32 %v654, 0.0
    %v671 = vmax.f32 %v655, 0.0
    %v672 = vmax.f32 %v656, 0.0
    %v673 = vld [vmem:[#allocation10] sm:$0xff]
    %v674 = vld [vmem:[#allocation10 + $0x8] sm:$0xff]
    %v675 = vld [vmem:[#allocation10 + $0x10] sm:$0xff]
    %v676 = vld [vmem:[#allocation10 + $0x18] sm:$0xff]
    %v677 = vld [vmem:[#allocation10 + $0x20] sm:$0xff]
    %v678 = vld [vmem:[#allocation10 + $0x28] sm:$0xff]
    %v679 = vld [vmem:[#allocation10 + $0x30] sm:$0xff]
    %v680 = vld [vmem:[#allocation10 + $0x38] sm:$0xff]
    %v681 = vld [vmem:[#allocation10 + $0x40] sm:$0xff]
    %v682 = vld [vmem:[#allocation10 + $0x48] sm:$0xff]
    %v683 = vld [vmem:[#allocation10 + $0x50] sm:$0xff]
    %v684 = vld [vmem:[#allocation10 + $0x58] sm:$0xff]
    %v685 = vld [vmem:[#allocation10 + $0x60] sm:$0xff]
    %v686 = vld [vmem:[#allocation10 + $0x68] sm:$0xff]
    %v687 = vld [vmem:[#allocation10 + $0x70] sm:$0xff]
    %v688 = vld [vmem:[#allocation10 + $0x78] sm:$0xff]
    %v689 = vld [vmem:[%s8] sm:$0x1]
    %v691 = vlaneseq
    %v692 = vshrl.u32 %v691, 7
    %v693 = vsub.s32 0, %v692
    %v694 = vrot.slane %v689, %v693
    %696 = vmatprep.subr.mxu0 0.0
    %697 = vmatpush1.msra.mxu0 %v673
    %698 = vmatprep.subr.mxu0 0.0
    %699 = vmatpush1.msra.mxu0 %v674
    %700 = vmatprep.subr.mxu0 0.0
    %701 = vmatpush1.msra.mxu0 %v675
    %702 = vmatprep.subr.mxu0 0.0
    %703 = vmatpush1.msra.mxu0 %v676
    %704 = vmatprep.subr.mxu0 0.0
    %705 = vmatpush1.msra.mxu0 %v677
    %706 = vmatprep.subr.mxu0 0.0
    %707 = vmatpush1.msra.mxu0 %v678
    %708 = vmatprep.subr.mxu0 0.0
    %709 = vmatpush1.msra.mxu0 %v679
    %710 = vmatprep.subr.mxu0 0.0
    %711 = vmatpush1.msra.mxu0 %v680
    %712 = vmatprep.subr.mxu0 0.0
    %713 = vmatpush1.msra.mxu0 %v681
    %714 = vmatprep.subr.mxu0 0.0
    %715 = vmatpush1.msra.mxu0 %v682
    %716 = vmatprep.subr.mxu0 0.0
    %717 = vmatpush1.msra.mxu0 %v683
    %718 = vmatprep.subr.mxu0 0.0
    %719 = vmatpush1.msra.mxu0 %v684
    %720 = vmatprep.subr.mxu0 0.0
    %721 = vmatpush1.msra.mxu0 %v685
    %722 = vmatprep.subr.mxu0 0.0
    %723 = vmatpush1.msra.mxu0 %v686
    %724 = vmatprep.subr.mxu0 0.0
    %725 = vmatpush1.msra.mxu0 %v687
    %726 = vmatprep.subr.mxu0 0.0
    %727 = vmatpush1.msra.mxu0 %v688
    %728 = vmatprep.subr.mxu0 0.0
    %729 = vmatpush1.msra.mxu0 0.0
    %730 = vmatprep.subr.mxu0 0.0
    %731 = vmatpush1.msra.mxu0 0.0
    %732 = vmatprep.subr.mxu0 0.0
    %733 = vmatpush1.msra.mxu0 0.0
    %734 = vmatprep.subr.mxu0 0.0
    %735 = vmatpush1.msra.mxu0 0.0
    %736 = vmatprep.subr.mxu0 0.0
    %737 = vmatpush1.msra.mxu0 0.0
    %738 = vmatprep.subr.mxu0 0.0
    %739 = vmatpush1.msra.mxu0 0.0
    %740 = vmatprep.subr.mxu0 0.0
    %741 = vmatpush1.msra.mxu0 0.0
    %742 = vmatprep.subr.mxu0 0.0
    %743 = vmatpush1.msra.mxu0 0.0
    %744 = vmatprep.subr.mxu0 0.0
    %745 = vmatpush1.msra.mxu0 0.0
    %746 = vmatprep.subr.mxu0 0.0
    %747 = vmatpush1.msra.mxu0 0.0
    %748 = vmatprep.subr.mxu0 0.0
    %749 = vmatpush1.msra.mxu0 0.0
    %750 = vmatprep.subr.mxu0 0.0
    %751 = vmatpush1.msra.mxu0 0.0
    %752 = vmatprep.subr.mxu0 0.0
    %753 = vmatpush1.msra.mxu0 0.0
    %754 = vmatprep.subr.mxu0 0.0
    %755 = vmatpush1.msra.mxu0 0.0
    %756 = vmatprep.subr.mxu0 0.0
    %757 = vmatpush1.msra.mxu0 0.0
    %758 = vmatprep.subr.mxu0 0.0
    %759 = vmatpush1.msra.mxu0 0.0
    %760 = vmatprep.mubr.f32.mxu0 0.0
    %761 = vmatmul.mubr.f32.gmra.mrb[0].mxu0 %v657
    %v762 = vpop.f32.mrb[0].mxu0
    %v763 = vadd.f32 %v694, %v762
    %v764 = vpop.f32.mrb[0].mxu0
    %765 = vmatprep.mubr.f32.mxu0 0.0
    %766 = vmatmul.mubr.f32.gmra.mrb[0].mxu0 %v658
    %v767 = vpop.f32.mrb[0].mxu0
    %v768 = vadd.f32 %v694, %v767
    %v769 = vpop.f32.mrb[0].mxu0
    %770 = vmatprep.mubr.f32.mxu0 0.0
    %771 = vmatmul.mubr.f32.gmra.mrb[0].mxu0 %v659
    %v772 = vpop.f32.mrb[0].mxu0
    %v773 = vadd.f32 %v694, %v772
    %v774 = vpop.f32.mrb[0].mxu0
    %775 = vmatprep.mubr.f32.mxu0 0.0
    %776 = vmatmul.mubr.f32.gmra.mrb[0].mxu0 %v660
    %v777 = vpop.f32.mrb[0].mxu0
    %v778 = vadd.f32 %v694, %v777
    %v779 = vpop.f32.mrb[0].mxu0
    %780 = vmatprep.mubr.f32.mxu0 0.0
    %781 = vmatmul.mubr.f32.gmra.mrb[0].mxu0 %v661
    %v782 = vpop.f32.mrb[0].mxu0
    %v783 = vadd.f32 %v694, %v782
    %v784 = vpop.f32.mrb[0].mxu0
    %785 = vmatprep.mubr.f32.mxu0 0.0
    %786 = vmatmul.mubr.f32.gmra.mrb[0].mxu0 %v662
    %v787 = vpop.f32.mrb[0].mxu0
    %v788 = vadd.f32 %v694, %v787
    %v789 = vpop.f32.mrb[0].mxu0
    %790 = vmatprep.mubr.f32.mxu0 0.0
    %791 = vmatmul.mubr.f32.gmra.mrb[0].mxu0 %v663
    %v792 = vpop.f32.mrb[0].mxu0
    %v793 = vadd.f32 %v694, %v792
    %v794 = vpop.f32.mrb[0].mxu0
    %795 = vmatprep.mubr.f32.mxu0 0.0
    %796 = vmatmul.mubr.f32.gmra.mrb[0].mxu0 %v664
    %v797 = vpop.f32.mrb[0].mxu0
    %v798 = vadd.f32 %v694, %v797
    %v799 = vpop.f32.mrb[0].mxu0
    %800 = vmatprep.mubr.f32.mxu0 0.0
    %801 = vmatmul.mubr.f32.gmra.mrb[0].mxu0 %v665
    %v802 = vpop.f32.mrb[0].mxu0
    %v803 = vadd.f32 %v694, %v802
    %v804 = vpop.f32.mrb[0].mxu0
    %805 = vmatprep.mubr.f32.mxu0 0.0
    %806 = vmatmul.mubr.f32.gmra.mrb[0].mxu0 %v666
    %v807 = vpop.f32.mrb[0].mxu0
    %v808 = vadd.f32 %v694, %v807
    %v809 = vpop.f32.mrb[0].mxu0
    %810 = vmatprep.mubr.f32.mxu0 0.0
    %811 = vmatmul.mubr.f32.gmra.mrb[0].mxu0 %v667
    %v812 = vpop.f32.mrb[0].mxu0
    %v813 = vadd.f32 %v694, %v812
    %v814 = vpop.f32.mrb[0].mxu0
    %815 = vmatprep.mubr.f32.mxu0 0.0
    %816 = vmatmul.mubr.f32.gmra.mrb[0].mxu0 %v668
    %v817 = vpop.f32.mrb[0].mxu0
    %v818 = vadd.f32 %v694, %v817
    %v819 = vpop.f32.mrb[0].mxu0
    %820 = vmatprep.mubr.f32.mxu0 0.0
    %821 = vmatmul.mubr.f32.gmra.mrb[0].mxu0 %v669
    %v822 = vpop.f32.mrb[0].mxu0
    %v823 = vadd.f32 %v694, %v822
    %v824 = vpop.f32.mrb[0].mxu0
    %825 = vmatprep.mubr.f32.mxu0 0.0
    %826 = vmatmul.mubr.f32.gmra.mrb[0].mxu0 %v670
    %v827 = vpop.f32.mrb[0].mxu0
    %v828 = vadd.f32 %v694, %v827
    %v829 = vpop.f32.mrb[0].mxu0
    %830 = vmatprep.mubr.f32.mxu0 0.0
    %831 = vmatmul.mubr.f32.gmra.mrb[0].mxu0 %v671
    %v832 = vpop.f32.mrb[0].mxu0
    %v833 = vadd.f32 %v694, %v832
    %v834 = vpop.f32.mrb[0].mxu0
    %835 = vmatprep.mubr.f32.mxu0 0.0
    %836 = vmatmul.mubr.f32.gmra.mrb[0].mxu0 %v672
    %v837 = vpop.f32.mrb[0].mxu0
    %v838 = vadd.f32 %v694, %v837
    %v839 = vpop.f32.mrb[0].mxu0
    %840 = vdwg.mxu0
    %v841 = vld [vmem:[%s9] sm:$0x1]
    %v842 = vld [vmem:[%s10] sm:$0x1]
    %v843 = vmul.f32 %v763, %v158
    %v844 = vmul.f32 %v768, %v159
    %v845 = vmul.f32 %v773, %v160
    %v846 = vmul.f32 %v778, %v161
    %v847 = vmul.f32 %v783, %v162
    %v848 = vmul.f32 %v788, %v163
    %v849 = vmul.f32 %v793, %v164
    %v850 = vmul.f32 %v798, %v165
    %v851 = vmul.f32 %v803, %v166
    %v852 = vmul.f32 %v808, %v167
    %v853 = vmul.f32 %v813, %v168
    %v854 = vmul.f32 %v818, %v169
    %v855 = vmul.f32 %v823, %v170
    %v856 = vmul.f32 %v828, %v171
    %v857 = vmul.f32 %v833, %v172
    %v858 = vmul.f32 %v838, %v173
    %v859 = vadd.f32 %v843, %v844
    %v860 = vadd.f32 %v859, %v845
    %v861 = vadd.f32 %v860, %v846
    %v862 = vadd.f32 %v861, %v847
    %v863 = vadd.f32 %v862, %v848
    %v864 = vadd.f32 %v863, %v849
    %v865 = vadd.f32 %v864, %v850
    %v866 = vadd.f32 %v865, %v851
    %v867 = vadd.f32 %v866, %v852
    %v868 = vadd.f32 %v867, %v853
    %v869 = vadd.f32 %v868, %v854
    %v870 = vadd.f32 %v869, %v855
    %v871 = vadd.f32 %v870, %v856
    %v872 = vadd.f32 %v871, %v857
    %v873 = vadd.f32 %v872, %v858
    %v874 = vrot.slane %v873, 4
    %v875 = vadd.f32 %v873, %v874
    %v876 = vrot.slane %v875, 2
    %v877 = vadd.f32 %v875, %v876
    %v878 = vrot.slane %v877, 1
    %v879 = vadd.f32 %v877, %v878
    %v880 = vmul.f32 %v843, %v763
    %v881 = vmul.f32 %v844, %v768
    %v882 = vmul.f32 %v845, %v773
    %v883 = vmul.f32 %v846, %v778
    %v884 = vmul.f32 %v847, %v783
    %v885 = vmul.f32 %v848, %v788
    %v886 = vmul.f32 %v849, %v793
    %v887 = vmul.f32 %v850, %v798
    %v888 = vmul.f32 %v851, %v803
    %v889 = vmul.f32 %v852, %v808
    %v890 = vmul.f32 %v853, %v813
    %v891 = vmul.f32 %v854, %v818
    %v892 = vmul.f32 %v855, %v823
    %v893 = vmul.f32 %v856, %v828
    %v894 = vmul.f32 %v857, %v833
    %v895 = vmul.f32 %v858, %v838
    %v896 = vadd.f32 %v880, %v881
    %v897 = vadd.f32 %v896, %v882
    %v898 = vadd.f32 %v897, %v883
    %v899 = vadd.f32 %v898, %v884
    %v900 = vadd.f32 %v899, %v885
    %v901 = vadd.f32 %v900, %v886
    %v902 = vadd.f32 %v901, %v887
    %v903 = vadd.f32 %v902, %v888
    %v904 = vadd.f32 %v903, %v889
    %v905 = vadd.f32 %v904, %v890
    %v906 = vadd.f32 %v905, %v891
    %v907 = vadd.f32 %v906, %v892
    %v908 = vadd.f32 %v907, %v893
    %v909 = vadd.f32 %v908, %v894
    %v910 = vadd.f32 %v909, %v895
    %v911 = vrot.slane %v910, 4
    %v912 = vadd.f32 %v910, %v911
    %v913 = vrot.slane %v912, 2
    %v914 = vadd.f32 %v912, %v913
    %v915 = vrot.slane %v914, 1
    %v916 = vadd.f32 %v914, %v915
    %v917 = vmul.f32 %v879, 0.0625
    %v918 = vmul.f32 %v916, 0.0625
    %v919 = vmul.f32 %v917, %v917
    %v920 = vsub.f32 %v918, %v919
    %v921 = vmax.f32 %v920, 0.0
    %v922 = vadd.f32 %v921, 1e-05
    %v923 = vrsqrt.pop %v922
    %v924 = vmul.f32 %v841, %v923
    %v925 = vmul.f32 %v917, %v924
    %v926 = vsub.f32 %v842, %v925
    %v928 = vlaneseq
    %v929 = vshrl.u32 %v928, 7
    %v930 = vsub.s32 0, %v929
    %v931 = vrot.slane %v924, %v930
    %v933 = vmul.f32 %v763, %v931
    %v934 = vmul.f32 %v768, %v931
    %v935 = vmul.f32 %v773, %v931
    %v936 = vmul.f32 %v778, %v931
    %v937 = vmul.f32 %v783, %v931
    %v938 = vmul.f32 %v788, %v931
    %v939 = vmul.f32 %v793, %v931
    %v940 = vmul.f32 %v798, %v931
    %v941 = vmul.f32 %v803, %v931
    %v942 = vmul.f32 %v808, %v931
    %v943 = vmul.f32 %v813, %v931
    %v944 = vmul.f32 %v818, %v931
    %v945 = vmul.f32 %v823, %v931
    %v946 = vmul.f32 %v828, %v931
    %v947 = vmul.f32 %v833, %v931
    %v948 = vmul.f32 %v838, %v931
    %v950 = vlaneseq
    %v951 = vshrl.u32 %v950, 7
    %v952 = vsub.s32 0, %v951
    %v953 = vrot.slane %v926, %v952
    %v955 = vadd.f32 %v933, %v953
    %v956 = vadd.f32 %v934, %v953
    %v957 = vadd.f32 %v935, %v953
    %v958 = vadd.f32 %v936, %v953
    %v959 = vadd.f32 %v937, %v953
    %v960 = vadd.f32 %v938, %v953
    %v961 = vadd.f32 %v939, %v953
    %v962 = vadd.f32 %v940, %v953
    %v963 = vadd.f32 %v941, %v953
    %v964 = vadd.f32 %v942, %v953
    %v965 = vadd.f32 %v943, %v953
    %v966 = vadd.f32 %v944, %v953
    %v967 = vadd.f32 %v945, %v953
    %v968 = vadd.f32 %v946, %v953
    %v969 = vadd.f32 %v947, %v953
    %v970 = vadd.f32 %v948, %v953
    %v971 = vmax.f32 %v955, 0.0
    %v972 = vmax.f32 %v956, 0.0
    %v973 = vmax.f32 %v957, 0.0
    %v974 = vmax.f32 %v958, 0.0
    %v975 = vmax.f32 %v959, 0.0
    %v976 = vmax.f32 %v960, 0.0
    %v977 = vmax.f32 %v961, 0.0
    %v978 = vmax.f32 %v962, 0.0
    %v979 = vmax.f32 %v963, 0.0
    %v980 = vmax.f32 %v964, 0.0
    %v981 = vmax.f32 %v965, 0.0
    %v982 = vmax.f32 %v966, 0.0
    %v983 = vmax.f32 %v967, 0.0
    %v984 = vmax.f32 %v968, 0.0
    %v985 = vmax.f32 %v969, 0.0
    %v986 = vmax.f32 %v970, 0.0
    %v987 = vmul.f32 %v971, %v158
    %v988 = vmul.f32 %v972, %v159
    %v989 = vmul.f32 %v973, %v160
    %v990 = vmul.f32 %v974, %v161
    %v991 = vmul.f32 %v975, %v162
    %v992 = vmul.f32 %v976, %v163
    %v993 = vmul.f32 %v977, %v164
    %v994 = vmul.f32 %v978, %v165
    %v995 = vmul.f32 %v979, %v166
    %v996 = vmul.f32 %v980, %v167
    %v997 = vmul.f32 %v981, %v168
    %v998 = vmul.f32 %v982, %v169
    %v999 = vmul.f32 %v983, %v170
    %v1000 = vmul.f32 %v984, %v171
    %v1001 = vmul.f32 %v985, %v172
    %v1002 = vmul.f32 %v986, %v173
    %v1003 = vpack.c.bf16 %v988, %v987
    %v1004 = vpack.c.bf16 %v990, %v989
    %v1005 = vpack.c.bf16 %v992, %v991
    %v1006 = vpack.c.bf16 %v994, %v993
    %v1007 = vpack.c.bf16 %v996, %v995
    %v1008 = vpack.c.bf16 %v998, %v997
    %v1009 = vpack.c.bf16 %v1000, %v999
    %v1010 = vpack.c.bf16 %v1002, %v1001
    %1011 = vmatprep.subr.bf16.mxu0 0
    %1012 = vmatpush1.bf16.msra.mxu0 %v1003
    %1013 = vmatprep.subr.bf16.mxu0 0
    %1014 = vmatpush1.bf16.msra.mxu0 %v1004
    %1015 = vmatprep.subr.bf16.mxu0 0
    %1016 = vmatpush1.bf16.msra.mxu0 %v1005
    %1017 = vmatprep.subr.bf16.mxu0 0
    %1018 = vmatpush1.bf16.msra.mxu0 %v1006
    %1019 = vmatprep.subr.bf16.mxu0 0
    %1020 = vmatpush1.bf16.msra.mxu0 %v1007
    %1021 = vmatprep.subr.bf16.mxu0 0
    %1022 = vmatpush1.bf16.msra.mxu0 %v1008
    %1023 = vmatprep.subr.bf16.mxu0 0
    %1024 = vmatpush1.bf16.msra.mxu0 %v1009
    %1025 = vmatprep.subr.bf16.mxu0 0
    %1026 = vmatpush1.bf16.msra.mxu0 %v1010
    %1027 = vmatprep.subr.bf16.mxu0 0
    %1028 = vmatpush1.bf16.msra.mxu0 0
    %1029 = vmatprep.subr.bf16.mxu0 0
    %1030 = vmatpush1.bf16.msra.mxu0 0
    %1031 = vmatprep.subr.bf16.mxu0 0
    %1032 = vmatpush1.bf16.msra.mxu0 0
    %1033 = vmatprep.subr.bf16.mxu0 0
    %1034 = vmatpush1.bf16.msra.mxu0 0
    %1035 = vmatprep.subr.bf16.mxu0 0
    %1036 = vmatpush1.bf16.msra.mxu0 0
    %1037 = vmatprep.subr.bf16.mxu0 0
    %1038 = vmatpush1.bf16.msra.mxu0 0
    %1039 = vmatprep.subr.bf16.mxu0 0
    %1040 = vmatpush1.bf16.msra.mxu0 0
    %1041 = vmatprep.subr.bf16.mxu0 0
    %1042 = vmatpush1.bf16.msra.mxu0 0
    %1043 = vmatprep.mubr.bf16.mxu0 0
    %1044 = vmatmul.mubr.bf16.gmra.mrb[0].mxu0 %v246
    %v1045 = vpop.f32.mrb[0].mxu0
    %v1046 = vadd.f32 0.0, %v1045
    %v1047 = vpop.f32.mrb[0].mxu0
    %v1048 = vpop.f32.mrb[0].mxu0
    %v1049 = vadd.f32 0.0, %v1048
    %v1050 = vpop.f32.mrb[0].mxu0
    %1051 = vmatprep.mubr.bf16.mxu0 0
    %1052 = vmatmul.mubr.bf16.gmra.mrb[0].mxu0 %v247
    %v1053 = vpop.f32.mrb[0].mxu0
    %v1054 = vadd.f32 0.0, %v1053
    %v1055 = vpop.f32.mrb[0].mxu0
    %v1056 = vpop.f32.mrb[0].mxu0
    %v1057 = vadd.f32 0.0, %v1056
    %v1058 = vpop.f32.mrb[0].mxu0
    %1059 = vmatprep.mubr.bf16.mxu0 0
    %1060 = vmatmul.mubr.bf16.gmra.mrb[0].mxu0 %v248
    %v1061 = vpop.f32.mrb[0].mxu0
    %v1062 = vadd.f32 0.0, %v1061
    %v1063 = vpop.f32.mrb[0].mxu0
    %v1064 = vpop.f32.mrb[0].mxu0
    %v1065 = vadd.f32 0.0, %v1064
    %v1066 = vpop.f32.mrb[0].mxu0
    %1067 = vmatprep.mubr.bf16.mxu0 0
    %1068 = vmatmul.mubr.bf16.gmra.mrb[0].mxu0 %v249
    %v1069 = vpop.f32.mrb[0].mxu0
    %v1070 = vadd.f32 0.0, %v1069
    %v1071 = vpop.f32.mrb[0].mxu0
    %v1072 = vpop.f32.mrb[0].mxu0
    %v1073 = vadd.f32 0.0, %v1072
    %v1074 = vpop.f32.mrb[0].mxu0
    %1075 = vmatprep.mubr.bf16.mxu0 0
    %1076 = vmatmul.mubr.bf16.gmra.mrb[0].mxu0 %v250
    %v1077 = vpop.f32.mrb[0].mxu0
    %v1078 = vadd.f32 0.0, %v1077
    %v1079 = vpop.f32.mrb[0].mxu0
    %v1080 = vpop.f32.mrb[0].mxu0
    %v1081 = vadd.f32 0.0, %v1080
    %v1082 = vpop.f32.mrb[0].mxu0
    %1083 = vmatprep.mubr.bf16.mxu0 0
    %1084 = vmatmul.mubr.bf16.gmra.mrb[0].mxu0 %v251
    %v1085 = vpop.f32.mrb[0].mxu0
    %v1086 = vadd.f32 0.0, %v1085
    %v1087 = vpop.f32.mrb[0].mxu0
    %v1088 = vpop.f32.mrb[0].mxu0
    %v1089 = vadd.f32 0.0, %v1088
    %v1090 = vpop.f32.mrb[0].mxu0
    %1091 = vmatprep.mubr.bf16.mxu0 0
    %1092 = vmatmul.mubr.bf16.gmra.mrb[0].mxu0 %v252
    %v1093 = vpop.f32.mrb[0].mxu0
    %v1094 = vadd.f32 0.0, %v1093
    %v1095 = vpop.f32.mrb[0].mxu0
    %v1096 = vpop.f32.mrb[0].mxu0
    %v1097 = vadd.f32 0.0, %v1096
    %v1098 = vpop.f32.mrb[0].mxu0
    %1099 = vmatprep.mubr.bf16.mxu0 0
    %1100 = vmatmul.mubr.bf16.gmra.mrb[0].mxu0 %v253
    %v1101 = vpop.f32.mrb[0].mxu0
    %v1102 = vadd.f32 0.0, %v1101
    %v1103 = vpop.f32.mrb[0].mxu0
    %v1104 = vpop.f32.mrb[0].mxu0
    %v1105 = vadd.f32 0.0, %v1104
    %v1106 = vpop.f32.mrb[0].mxu0
    %1107 = vdwg.mxu0
    %s1108 = scalar_lea.vmem [#allocation8], 128
    %v1109 = vld [vmem:[%s1108] sm:$0xff]
    %v1110 = vld [vmem:[%s1108 + $0x8] sm:$0xff]
    %v1111 = vld [vmem:[%s1108 + $0x10] sm:$0xff]
    %v1112 = vld [vmem:[%s1108 + $0x18] sm:$0xff]
    %v1113 = vld [vmem:[%s1108 + $0x20] sm:$0xff]
    %v1114 = vld [vmem:[%s1108 + $0x28] sm:$0xff]
    %v1115 = vld [vmem:[%s1108 + $0x30] sm:$0xff]
    %v1116 = vld [vmem:[%s1108 + $0x38] sm:$0xff]
    %v1117 = vld [vmem:[%s1108 + $0x40] sm:$0xff]
    %v1118 = vld [vmem:[%s1108 + $0x48] sm:$0xff]
    %v1119 = vld [vmem:[%s1108 + $0x50] sm:$0xff]
    %v1120 = vld [vmem:[%s1108 + $0x58] sm:$0xff]
    %v1121 = vld [vmem:[%s1108 + $0x60] sm:$0xff]
    %v1122 = vld [vmem:[%s1108 + $0x68] sm:$0xff]
    %v1123 = vld [vmem:[%s1108 + $0x70] sm:$0xff]
    %v1124 = vld [vmem:[%s1108 + $0x78] sm:$0xff]
    %s1125 = scalar_lea.vmem %s4, 1
    %v1126 = vld [vmem:[%s1125] sm:$0x1]
    %v1128 = vlaneseq
    %v1129 = vshrl.u32 %v1128, 7
    %v1130 = vsub.s32 0, %v1129
    %v1131 = vrot.slane %v1126, %v1130
    %1133 = vmatprep.subr.mxu0 0.0
    %1134 = vmatpush1.msra.mxu0 %v1109
    %1135 = vmatprep.subr.mxu0 0.0
    %1136 = vmatpush1.msra.mxu0 %v1110
    %1137 = vmatprep.subr.mxu0 0.0
    %1138 = vmatpush1.msra.mxu0 %v1111
    %1139 = vmatprep.subr.mxu0 0.0
    %1140 = vmatpush1.msra.mxu0 %v1112
    %1141 = vmatprep.subr.mxu0 0.0
    %1142 = vmatpush1.msra.mxu0 %v1113
    %1143 = vmatprep.subr.mxu0 0.0
    %1144 = vmatpush1.msra.mxu0 %v1114
    %1145 = vmatprep.subr.mxu0 0.0
    %1146 = vmatpush1.msra.mxu0 %v1115
    %1147 = vmatprep.subr.mxu0 0.0
    %1148 = vmatpush1.msra.mxu0 %v1116
    %1149 = vmatprep.subr.mxu0 0.0
    %1150 = vmatpush1.msra.mxu0 %v1117
    %1151 = vmatprep.subr.mxu0 0.0
    %1152 = vmatpush1.msra.mxu0 %v1118
    %1153 = vmatprep.subr.mxu0 0.0
    %1154 = vmatpush1.msra.mxu0 %v1119
    %1155 = vmatprep.subr.mxu0 0.0
    %1156 = vmatpush1.msra.mxu0 %v1120
    %1157 = vmatprep.subr.mxu0 0.0
    %1158 = vmatpush1.msra.mxu0 %v1121
    %1159 = vmatprep.subr.mxu0 0.0
    %1160 = vmatpush1.msra.mxu0 %v1122
    %1161 = vmatprep.subr.mxu0 0.0
    %1162 = vmatpush1.msra.mxu0 %v1123
    %1163 = vmatprep.subr.mxu0 0.0
    %1164 = vmatpush1.msra.mxu0 %v1124
    %1165 = vmatprep.subr.mxu0 0.0
    %1166 = vmatpush1.msra.mxu0 0.0
    %1167 = vmatprep.subr.mxu0 0.0
    %1168 = vmatpush1.msra.mxu0 0.0
    %1169 = vmatprep.subr.mxu0 0.0
    %1170 = vmatpush1.msra.mxu0 0.0
    %1171 = vmatprep.subr.mxu0 0.0
    %1172 = vmatpush1.msra.mxu0 0.0
    %1173 = vmatprep.subr.mxu0 0.0
    %1174 = vmatpush1.msra.mxu0 0.0
    %1175 = vmatprep.subr.mxu0 0.0
    %1176 = vmatpush1.msra.mxu0 0.0
    %1177 = vmatprep.subr.mxu0 0.0
    %1178 = vmatpush1.msra.mxu0 0.0
    %1179 = vmatprep.subr.mxu0 0.0
    %1180 = vmatpush1.msra.mxu0 0.0
    %1181 = vmatprep.subr.mxu0 0.0
    %1182 = vmatpush1.msra.mxu0 0.0
    %1183 = vmatprep.subr.mxu0 0.0
    %1184 = vmatpush1.msra.mxu0 0.0
    %1185 = vmatprep.subr.mxu0 0.0
    %1186 = vmatpush1.msra.mxu0 0.0
    %1187 = vmatprep.subr.mxu0 0.0
    %1188 = vmatpush1.msra.mxu0 0.0
    %1189 = vmatprep.subr.mxu0 0.0
    %1190 = vmatpush1.msra.mxu0 0.0
    %1191 = vmatprep.subr.mxu0 0.0
    %1192 = vmatpush1.msra.mxu0 0.0
    %1193 = vmatprep.subr.mxu0 0.0
    %1194 = vmatpush1.msra.mxu0 0.0
    %1195 = vmatprep.subr.mxu0 0.0
    %1196 = vmatpush1.msra.mxu0 0.0
    %1197 = vmatprep.mubr.f32.mxu0 0.0
    %1198 = vmatmul.mubr.f32.gmra.mrb[0].mxu0 %v1046
    %v1199 = vpop.f32.mrb[0].mxu0
    %v1200 = vadd.f32 %v1131, %v1199
    %v1201 = vpop.f32.mrb[0].mxu0
    %1202 = vmatprep.mubr.f32.mxu0 0.0
    %1203 = vmatmul.mubr.f32.gmra.mrb[0].mxu0 %v1049
    %v1204 = vpop.f32.mrb[0].mxu0
    %v1205 = vadd.f32 %v1131, %v1204
    %v1206 = vpop.f32.mrb[0].mxu0
    %1207 = vmatprep.mubr.f32.mxu0 0.0
    %1208 = vmatmul.mubr.f32.gmra.mrb[0].mxu0 %v1054
    %v1209 = vpop.f32.mrb[0].mxu0
    %v1210 = vadd.f32 %v1131, %v1209
    %v1211 = vpop.f32.mrb[0].mxu0
    %1212 = vmatprep.mubr.f32.mxu0 0.0
    %1213 = vmatmul.mubr.f32.gmra.mrb[0].mxu0 %v1057
    %v1214 = vpop.f32.mrb[0].mxu0
    %v1215 = vadd.f32 %v1131, %v1214
    %v1216 = vpop.f32.mrb[0].mxu0
    %1217 = vmatprep.mubr.f32.mxu0 0.0
    %1218 = vmatmul.mubr.f32.gmra.mrb[0].mxu0 %v1062
    %v1219 = vpop.f32.mrb[0].mxu0
    %v1220 = vadd.f32 %v1131, %v1219
    %v1221 = vpop.f32.mrb[0].mxu0
    %1222 = vmatprep.mubr.f32.mxu0 0.0
    %1223 = vmatmul.mubr.f32.gmra.mrb[0].mxu0 %v1065
    %v1224 = vpop.f32.mrb[0].mxu0
    %v1225 = vadd.f32 %v1131, %v1224
    %v1226 = vpop.f32.mrb[0].mxu0
    %1227 = vmatprep.mubr.f32.mxu0 0.0
    %1228 = vmatmul.mubr.f32.gmra.mrb[0].mxu0 %v1070
    %v1229 = vpop.f32.mrb[0].mxu0
    %v1230 = vadd.f32 %v1131, %v1229
    %v1231 = vpop.f32.mrb[0].mxu0
    %1232 = vmatprep.mubr.f32.mxu0 0.0
    %1233 = vmatmul.mubr.f32.gmra.mrb[0].mxu0 %v1073
    %v1234 = vpop.f32.mrb[0].mxu0
    %v1235 = vadd.f32 %v1131, %v1234
    %v1236 = vpop.f32.mrb[0].mxu0
    %1237 = vmatprep.mubr.f32.mxu0 0.0
    %1238 = vmatmul.mubr.f32.gmra.mrb[0].mxu0 %v1078
    %v1239 = vpop.f32.mrb[0].mxu0
    %v1240 = vadd.f32 %v1131, %v1239
    %v1241 = vpop.f32.mrb[0].mxu0
    %1242 = vmatprep.mubr.f32.mxu0 0.0
    %1243 = vmatmul.mubr.f32.gmra.mrb[0].mxu0 %v1081
    %v1244 = vpop.f32.mrb[0].mxu0
    %v1245 = vadd.f32 %v1131, %v1244
    %v1246 = vpop.f32.mrb[0].mxu0
    %1247 = vmatprep.mubr.f32.mxu0 0.0
    %1248 = vmatmul.mubr.f32.gmra.mrb[0].mxu0 %v1086
    %v1249 = vpop.f32.mrb[0].mxu0
    %v1250 = vadd.f32 %v1131, %v1249
    %v1251 = vpop.f32.mrb[0].mxu0
    %1252 = vmatprep.mubr.f32.mxu0 0.0
    %1253 = vmatmul.mubr.f32.gmra.mrb[0].mxu0 %v1089
    %v1254 = vpop.f32.mrb[0].mxu0
    %v1255 = vadd.f32 %v1131, %v1254
    %v1256 = vpop.f32.mrb[0].mxu0
    %1257 = vmatprep.mubr.f32.mxu0 0.0
    %1258 = vmatmul.mubr.f32.gmra.mrb[0].mxu0 %v1094
    %v1259 = vpop.f32.mrb[0].mxu0
    %v1260 = vadd.f32 %v1131, %v1259
    %v1261 = vpop.f32.mrb[0].mxu0
    %1262 = vmatprep.mubr.f32.mxu0 0.0
    %1263 = vmatmul.mubr.f32.gmra.mrb[0].mxu0 %v1097
    %v1264 = vpop.f32.mrb[0].mxu0
    %v1265 = vadd.f32 %v1131, %v1264
    %v1266 = vpop.f32.mrb[0].mxu0
    %1267 = vmatprep.mubr.f32.mxu0 0.0
    %1268 = vmatmul.mubr.f32.gmra.mrb[0].mxu0 %v1102
    %v1269 = vpop.f32.mrb[0].mxu0
    %v1270 = vadd.f32 %v1131, %v1269
    %v1271 = vpop.f32.mrb[0].mxu0
    %1272 = vmatprep.mubr.f32.mxu0 0.0
    %1273 = vmatmul.mubr.f32.gmra.mrb[0].mxu0 %v1105
    %v1274 = vpop.f32.mrb[0].mxu0
    %v1275 = vadd.f32 %v1131, %v1274
    %v1276 = vpop.f32.mrb[0].mxu0
    %1277 = vdwg.mxu0
    %s1278 = scalar_lea.vmem %s5, 1
    %v1279 = vld [vmem:[%s1278] sm:$0x1]
    %s1280 = scalar_lea.vmem %s6, 1
    %v1281 = vld [vmem:[%s1280] sm:$0x1]
    %v1282 = vmul.f32 %v1200, %v158
    %v1283 = vmul.f32 %v1205, %v159
    %v1284 = vmul.f32 %v1210, %v160
    %v1285 = vmul.f32 %v1215, %v161
    %v1286 = vmul.f32 %v1220, %v162
    %v1287 = vmul.f32 %v1225, %v163
    %v1288 = vmul.f32 %v1230, %v164
    %v1289 = vmul.f32 %v1235, %v165
    %v1290 = vmul.f32 %v1240, %v166
    %v1291 = vmul.f32 %v1245, %v167
    %v1292 = vmul.f32 %v1250, %v168
    %v1293 = vmul.f32 %v1255, %v169
    %v1294 = vmul.f32 %v1260, %v170
    %v1295 = vmul.f32 %v1265, %v171
    %v1296 = vmul.f32 %v1270, %v172
    %v1297 = vmul.f32 %v1275, %v173
    %v1298 = vadd.f32 %v1282, %v1283
    %v1299 = vadd.f32 %v1298, %v1284
    %v1300 = vadd.f32 %v1299, %v1285
    %v1301 = vadd.f32 %v1300, %v1286
    %v1302 = vadd.f32 %v1301, %v1287
    %v1303 = vadd.f32 %v1302, %v1288
    %v1304 = vadd.f32 %v1303, %v1289
    %v1305 = vadd.f32 %v1304, %v1290
    %v1306 = vadd.f32 %v1305, %v1291
    %v1307 = vadd.f32 %v1306, %v1292
    %v1308 = vadd.f32 %v1307, %v1293
    %v1309 = vadd.f32 %v1308, %v1294
    %v1310 = vadd.f32 %v1309, %v1295
    %v1311 = vadd.f32 %v1310, %v1296
    %v1312 = vadd.f32 %v1311, %v1297
    %v1313 = vrot.slane %v1312, 4
    %v1314 = vadd.f32 %v1312, %v1313
    %v1315 = vrot.slane %v1314, 2
    %v1316 = vadd.f32 %v1314, %v1315
    %v1317 = vrot.slane %v1316, 1
    %v1318 = vadd.f32 %v1316, %v1317
    %v1319 = vmul.f32 %v1282, %v1200
    %v1320 = vmul.f32 %v1283, %v1205
    %v1321 = vmul.f32 %v1284, %v1210
    %v1322 = vmul.f32 %v1285, %v1215
    %v1323 = vmul.f32 %v1286, %v1220
    %v1324 = vmul.f32 %v1287, %v1225
    %v1325 = vmul.f32 %v1288, %v1230
    %v1326 = vmul.f32 %v1289, %v1235
    %v1327 = vmul.f32 %v1290, %v1240
    %v1328 = vmul.f32 %v1291, %v1245
    %v1329 = vmul.f32 %v1292, %v1250
    %v1330 = vmul.f32 %v1293, %v1255
    %v1331 = vmul.f32 %v1294, %v1260
    %v1332 = vmul.f32 %v1295, %v1265
    %v1333 = vmul.f32 %v1296, %v1270
    %v1334 = vmul.f32 %v1297, %v1275
    %v1335 = vadd.f32 %v1319, %v1320
    %v1336 = vadd.f32 %v1335, %v1321
    %v1337 = vadd.f32 %v1336, %v1322
    %v1338 = vadd.f32 %v1337, %v1323
    %v1339 = vadd.f32 %v1338, %v1324
    %v1340 = vadd.f32 %v1339, %v1325
    %v1341 = vadd.f32 %v1340, %v1326
    %v1342 = vadd.f32 %v1341, %v1327
    %v1343 = vadd.f32 %v1342, %v1328
    %v1344 = vadd.f32 %v1343, %v1329
    %v1345 = vadd.f32 %v1344, %v1330
    %v1346 = vadd.f32 %v1345, %v1331
    %v1347 = vadd.f32 %v1346, %v1332
    %v1348 = vadd.f32 %v1347, %v1333
    %v1349 = vadd.f32 %v1348, %v1334
    %v1350 = vrot.slane %v1349, 4
    %v1351 = vadd.f32 %v1349, %v1350
    %v1352 = vrot.slane %v1351, 2
    %v1353 = vadd.f32 %v1351, %v1352
    %v1354 = vrot.slane %v1353, 1
    %v1355 = vadd.f32 %v1353, %v1354
    %v1356 = vmul.f32 %v1318, 0.0625
    %v1357 = vmul.f32 %v1355, 0.0625
    %v1358 = vmul.f32 %v1356, %v1356
    %v1359 = vsub.f32 %v1357, %v1358
    %v1360 = vmax.f32 %v1359, 0.0
    %v1361 = vadd.f32 %v1360, 1e-05
    %v1362 = vrsqrt.pop %v1361
    %v1363 = vmul.f32 %v1279, %v1362
    %v1364 = vmul.f32 %v1356, %v1363
    %v1365 = vsub.f32 %v1281, %v1364
    %v1367 = vlaneseq
    %v1368 = vshrl.u32 %v1367, 7
    %v1369 = vsub.s32 0, %v1368
    %v1370 = vrot.slane %v1363, %v1369
    %v1372 = vmul.f32 %v1200, %v1370
    %v1373 = vmul.f32 %v1205, %v1370
    %v1374 = vmul.f32 %v1210, %v1370
    %v1375 = vmul.f32 %v1215, %v1370
    %v1376 = vmul.f32 %v1220, %v1370
    %v1377 = vmul.f32 %v1225, %v1370
    %v1378 = vmul.f32 %v1230, %v1370
    %v1379 = vmul.f32 %v1235, %v1370
    %v1380 = vmul.f32 %v1240, %v1370
    %v1381 = vmul.f32 %v1245, %v1370
    %v1382 = vmul.f32 %v1250, %v1370
    %v1383 = vmul.f32 %v1255, %v1370
    %v1384 = vmul.f32 %v1260, %v1370
    %v1385 = vmul.f32 %v1265, %v1370
    %v1386 = vmul.f32 %v1270, %v1370
    %v1387 = vmul.f32 %v1275, %v1370
    %v1389 = vlaneseq
    %v1390 = vshrl.u32 %v1389, 7
    %v1391 = vsub.s32 0, %v1390
    %v1392 = vrot.slane %v1365, %v1391
    %v1394 = vadd.f32 %v1372, %v1392
    %v1395 = vadd.f32 %v1373, %v1392
    %v1396 = vadd.f32 %v1374, %v1392
    %v1397 = vadd.f32 %v1375, %v1392
    %v1398 = vadd.f32 %v1376, %v1392
    %v1399 = vadd.f32 %v1377, %v1392
    %v1400 = vadd.f32 %v1378, %v1392
    %v1401 = vadd.f32 %v1379, %v1392
    %v1402 = vadd.f32 %v1380, %v1392
    %v1403 = vadd.f32 %v1381, %v1392
    %v1404 = vadd.f32 %v1382, %v1392
    %v1405 = vadd.f32 %v1383, %v1392
    %v1406 = vadd.f32 %v1384, %v1392
    %v1407 = vadd.f32 %v1385, %v1392
    %v1408 = vadd.f32 %v1386, %v1392
    %v1409 = vadd.f32 %v1387, %v1392
    %v1410 = vmax.f32 %v1394, 0.0
    %v1411 = vmax.f32 %v1395, 0.0
    %v1412 = vmax.f32 %v1396, 0.0
    %v1413 = vmax.f32 %v1397, 0.0
    %v1414 = vmax.f32 %v1398, 0.0
    %v1415 = vmax.f32 %v1399, 0.0
    %v1416 = vmax.f32 %v1400, 0.0
    %v1417 = vmax.f32 %v1401, 0.0
    %v1418 = vmax.f32 %v1402, 0.0
    %v1419 = vmax.f32 %v1403, 0.0
    %v1420 = vmax.f32 %v1404, 0.0
    %v1421 = vmax.f32 %v1405, 0.0
    %v1422 = vmax.f32 %v1406, 0.0
    %v1423 = vmax.f32 %v1407, 0.0
    %v1424 = vmax.f32 %v1408, 0.0
    %v1425 = vmax.f32 %v1409, 0.0
    %s1426 = scalar_lea.vmem [#allocation10], 128
    %v1427 = vld [vmem:[%s1426] sm:$0xff]
    %v1428 = vld [vmem:[%s1426 + $0x8] sm:$0xff]
    %v1429 = vld [vmem:[%s1426 + $0x10] sm:$0xff]
    %v1430 = vld [vmem:[%s1426 + $0x18] sm:$0xff]
    %v1431 = vld [vmem:[%s1426 + $0x20] sm:$0xff]
    %v1432 = vld [vmem:[%s1426 + $0x28] sm:$0xff]
    %v1433 = vld [vmem:[%s1426 + $0x30] sm:$0xff]
    %v1434 = vld [vmem:[%s1426 + $0x38] sm:$0xff]
    %v1435 = vld [vmem:[%s1426 + $0x40] sm:$0xff]
    %v1436 = vld [vmem:[%s1426 + $0x48] sm:$0xff]
    %v1437 = vld [vmem:[%s1426 + $0x50] sm:$0xff]
    %v1438 = vld [vmem:[%s1426 + $0x58] sm:$0xff]
    %v1439 = vld [vmem:[%s1426 + $0x60] sm:$0xff]
    %v1440 = vld [vmem:[%s1426 + $0x68] sm:$0xff]
    %v1441 = vld [vmem:[%s1426 + $0x70] sm:$0xff]
    %v1442 = vld [vmem:[%s1426 + $0x78] sm:$0xff]
    %s1443 = scalar_lea.vmem %s8, 1
    %v1444 = vld [vmem:[%s1443] sm:$0x1]
    %v1446 = vlaneseq
    %v1447 = vshrl.u32 %v1446, 7
    %v1448 = vsub.s32 0, %v1447
    %v1449 = vrot.slane %v1444, %v1448
    %1451 = vmatprep.subr.mxu0 0.0
    %1452 = vmatpush1.msra.mxu0 %v1427
    %1453 = vmatprep.subr.mxu0 0.0
    %1454 = vmatpush1.msra.mxu0 %v1428
    %1455 = vmatprep.subr.mxu0 0.0
    %1456 = vmatpush1.msra.mxu0 %v1429
    %1457 = vmatprep.subr.mxu0 0.0
    %1458 = vmatpush1.msra.mxu0 %v1430
    %1459 = vmatprep.subr.mxu0 0.0
    %1460 = vmatpush1.msra.mxu0 %v1431
    %1461 = vmatprep.subr.mxu0 0.0
    %1462 = vmatpush1.msra.mxu0 %v1432
    %1463 = vmatprep.subr.mxu0 0.0
    %1464 = vmatpush1.msra.mxu0 %v1433
    %1465 = vmatprep.subr.mxu0 0.0
    %1466 = vmatpush1.msra.mxu0 %v1434
    %1467 = vmatprep.subr.mxu0 0.0
    %1468 = vmatpush1.msra.mxu0 %v1435
    %1469 = vmatprep.subr.mxu0 0.0
    %1470 = vmatpush1.msra.mxu0 %v1436
    %1471 = vmatprep.subr.mxu0 0.0
    %1472 = vmatpush1.msra.mxu0 %v1437
    %1473 = vmatprep.subr.mxu0 0.0
    %1474 = vmatpush1.msra.mxu0 %v1438
    %1475 = vmatprep.subr.mxu0 0.0
    %1476 = vmatpush1.msra.mxu0 %v1439
    %1477 = vmatprep.subr.mxu0 0.0
    %1478 = vmatpush1.msra.mxu0 %v1440
    %1479 = vmatprep.subr.mxu0 0.0
    %1480 = vmatpush1.msra.mxu0 %v1441
    %1481 = vmatprep.subr.mxu0 0.0
    %1482 = vmatpush1.msra.mxu0 %v1442
    %1483 = vmatprep.subr.mxu0 0.0
    %1484 = vmatpush1.msra.mxu0 0.0
    %1485 = vmatprep.subr.mxu0 0.0
    %1486 = vmatpush1.msra.mxu0 0.0
    %1487 = vmatprep.subr.mxu0 0.0
    %1488 = vmatpush1.msra.mxu0 0.0
    %1489 = vmatprep.subr.mxu0 0.0
    %1490 = vmatpush1.msra.mxu0 0.0
    %1491 = vmatprep.subr.mxu0 0.0
    %1492 = vmatpush1.msra.mxu0 0.0
    %1493 = vmatprep.subr.mxu0 0.0
    %1494 = vmatpush1.msra.mxu0 0.0
    %1495 = vmatprep.subr.mxu0 0.0
    %1496 = vmatpush1.msra.mxu0 0.0
    %1497 = vmatprep.subr.mxu0 0.0
    %1498 = vmatpush1.msra.mxu0 0.0
    %1499 = vmatprep.subr.mxu0 0.0
    %1500 = vmatpush1.msra.mxu0 0.0
    %1501 = vmatprep.subr.mxu0 0.0
    %1502 = vmatpush1.msra.mxu0 0.0
    %1503 = vmatprep.subr.mxu0 0.0
    %1504 = vmatpush1.msra.mxu0 0.0
    %1505 = vmatprep.subr.mxu0 0.0
    %1506 = vmatpush1.msra.mxu0 0.0
    %1507 = vmatprep.subr.mxu0 0.0
    %1508 = vmatpush1.msra.mxu0 0.0
    %1509 = vmatprep.subr.mxu0 0.0
    %1510 = vmatpush1.msra.mxu0 0.0
    %1511 = vmatprep.subr.mxu0 0.0
    %1512 = vmatpush1.msra.mxu0 0.0
    %1513 = vmatprep.subr.mxu0 0.0
    %1514 = vmatpush1.msra.mxu0 0.0
    %1515 = vmatprep.mubr.f32.mxu0 0.0
    %1516 = vmatmul.mubr.f32.gmra.mrb[0].mxu0 %v1410
    %v1517 = vpop.f32.mrb[0].mxu0
    %v1518 = vadd.f32 %v1449, %v1517
    %v1519 = vpop.f32.mrb[0].mxu0
    %1520 = vmatprep.mubr.f32.mxu0 0.0
    %1521 = vmatmul.mubr.f32.gmra.mrb[0].mxu0 %v1411
    %v1522 = vpop.f32.mrb[0].mxu0
    %v1523 = vadd.f32 %v1449, %v1522
    %v1524 = vpop.f32.mrb[0].mxu0
    %1525 = vmatprep.mubr.f32.mxu0 0.0
    %1526 = vmatmul.mubr.f32.gmra.mrb[0].mxu0 %v1412
    %v1527 = vpop.f32.mrb[0].mxu0
    %v1528 = vadd.f32 %v1449, %v1527
    %v1529 = vpop.f32.mrb[0].mxu0
    %1530 = vmatprep.mubr.f32.mxu0 0.0
    %1531 = vmatmul.mubr.f32.gmra.mrb[0].mxu0 %v1413
    %v1532 = vpop.f32.mrb[0].mxu0
    %v1533 = vadd.f32 %v1449, %v1532
    %v1534 = vpop.f32.mrb[0].mxu0
    %1535 = vmatprep.mubr.f32.mxu0 0.0
    %1536 = vmatmul.mubr.f32.gmra.mrb[0].mxu0 %v1414
    %v1537 = vpop.f32.mrb[0].mxu0
    %v1538 = vadd.f32 %v1449, %v1537
    %v1539 = vpop.f32.mrb[0].mxu0
    %1540 = vmatprep.mubr.f32.mxu0 0.0
    %1541 = vmatmul.mubr.f32.gmra.mrb[0].mxu0 %v1415
    %v1542 = vpop.f32.mrb[0].mxu0
    %v1543 = vadd.f32 %v1449, %v1542
    %v1544 = vpop.f32.mrb[0].mxu0
    %1545 = vmatprep.mubr.f32.mxu0 0.0
    %1546 = vmatmul.mubr.f32.gmra.mrb[0].mxu0 %v1416
    %v1547 = vpop.f32.mrb[0].mxu0
    %v1548 = vadd.f32 %v1449, %v1547
    %v1549 = vpop.f32.mrb[0].mxu0
    %1550 = vmatprep.mubr.f32.mxu0 0.0
    %1551 = vmatmul.mubr.f32.gmra.mrb[0].mxu0 %v1417
    %v1552 = vpop.f32.mrb[0].mxu0
    %v1553 = vadd.f32 %v1449, %v1552
    %v1554 = vpop.f32.mrb[0].mxu0
    %1555 = vmatprep.mubr.f32.mxu0 0.0
    %1556 = vmatmul.mubr.f32.gmra.mrb[0].mxu0 %v1418
    %v1557 = vpop.f32.mrb[0].mxu0
    %v1558 = vadd.f32 %v1449, %v1557
    %v1559 = vpop.f32.mrb[0].mxu0
    %1560 = vmatprep.mubr.f32.mxu0 0.0
    %1561 = vmatmul.mubr.f32.gmra.mrb[0].mxu0 %v1419
    %v1562 = vpop.f32.mrb[0].mxu0
    %v1563 = vadd.f32 %v1449, %v1562
    %v1564 = vpop.f32.mrb[0].mxu0
    %1565 = vmatprep.mubr.f32.mxu0 0.0
    %1566 = vmatmul.mubr.f32.gmra.mrb[0].mxu0 %v1420
    %v1567 = vpop.f32.mrb[0].mxu0
    %v1568 = vadd.f32 %v1449, %v1567
    %v1569 = vpop.f32.mrb[0].mxu0
    %1570 = vmatprep.mubr.f32.mxu0 0.0
    %1571 = vmatmul.mubr.f32.gmra.mrb[0].mxu0 %v1421
    %v1572 = vpop.f32.mrb[0].mxu0
    %v1573 = vadd.f32 %v1449, %v1572
    %v1574 = vpop.f32.mrb[0].mxu0
    %1575 = vmatprep.mubr.f32.mxu0 0.0
    %1576 = vmatmul.mubr.f32.gmra.mrb[0].mxu0 %v1422
    %v1577 = vpop.f32.mrb[0].mxu0
    %v1578 = vadd.f32 %v1449, %v1577
    %v1579 = vpop.f32.mrb[0].mxu0
    %1580 = vmatprep.mubr.f32.mxu0 0.0
    %1581 = vmatmul.mubr.f32.gmra.mrb[0].mxu0 %v1423
    %v1582 = vpop.f32.mrb[0].mxu0
    %v1583 = vadd.f32 %v1449, %v1582
    %v1584 = vpop.f32.mrb[0].mxu0
    %1585 = vmatprep.mubr.f32.mxu0 0.0
    %1586 = vmatmul.mubr.f32.gmra.mrb[0].mxu0 %v1424
    %v1587 = vpop.f32.mrb[0].mxu0
    %v1588 = vadd.f32 %v1449, %v1587
    %v1589 = vpop.f32.mrb[0].mxu0
    %1590 = vmatprep.mubr.f32.mxu0 0.0
    %1591 = vmatmul.mubr.f32.gmra.mrb[0].mxu0 %v1425
    %v1592 = vpop.f32.mrb[0].mxu0
    %v1593 = vadd.f32 %v1449, %v1592
    %v1594 = vpop.f32.mrb[0].mxu0
    %1595 = vdwg.mxu0
    %s1596 = scalar_lea.vmem %s9, 1
    %v1597 = vld [vmem:[%s1596] sm:$0x1]
    %s1598 = scalar_lea.vmem %s10, 1
    %v1599 = vld [vmem:[%s1598] sm:$0x1]
    %v1600 = vmul.f32 %v1518, %v158
    %v1601 = vmul.f32 %v1523, %v159
    %v1602 = vmul.f32 %v1528, %v160
    %v1603 = vmul.f32 %v1533, %v161
    %v1604 = vmul.f32 %v1538, %v162
    %v1605 = vmul.f32 %v1543, %v163
    %v1606 = vmul.f32 %v1548, %v164
    %v1607 = vmul.f32 %v1553, %v165
    %v1608 = vmul.f32 %v1558, %v166
    %v1609 = vmul.f32 %v1563, %v167
    %v1610 = vmul.f32 %v1568, %v168
    %v1611 = vmul.f32 %v1573, %v169
    %v1612 = vmul.f32 %v1578, %v170
    %v1613 = vmul.f32 %v1583, %v171
    %v1614 = vmul.f32 %v1588, %v172
    %v1615 = vmul.f32 %v1593, %v173
    %v1616 = vadd.f32 %v1600, %v1601
    %v1617 = vadd.f32 %v1616, %v1602
    %v1618 = vadd.f32 %v1617, %v1603
    %v1619 = vadd.f32 %v1618, %v1604
    %v1620 = vadd.f32 %v1619, %v1605
    %v1621 = vadd.f32 %v1620, %v1606
    %v1622 = vadd.f32 %v1621, %v1607
    %v1623 = vadd.f32 %v1622, %v1608
    %v1624 = vadd.f32 %v1623, %v1609
    %v1625 = vadd.f32 %v1624, %v1610
    %v1626 = vadd.f32 %v1625, %v1611
    %v1627 = vadd.f32 %v1626, %v1612
    %v1628 = vadd.f32 %v1627, %v1613
    %v1629 = vadd.f32 %v1628, %v1614
    %v1630 = vadd.f32 %v1629, %v1615
    %v1631 = vrot.slane %v1630, 4
    %v1632 = vadd.f32 %v1630, %v1631
    %v1633 = vrot.slane %v1632, 2
    %v1634 = vadd.f32 %v1632, %v1633
    %v1635 = vrot.slane %v1634, 1
    %v1636 = vadd.f32 %v1634, %v1635
    %v1637 = vmul.f32 %v1600, %v1518
    %v1638 = vmul.f32 %v1601, %v1523
    %v1639 = vmul.f32 %v1602, %v1528
    %v1640 = vmul.f32 %v1603, %v1533
    %v1641 = vmul.f32 %v1604, %v1538
    %v1642 = vmul.f32 %v1605, %v1543
    %v1643 = vmul.f32 %v1606, %v1548
    %v1644 = vmul.f32 %v1607, %v1553
    %v1645 = vmul.f32 %v1608, %v1558
    %v1646 = vmul.f32 %v1609, %v1563
    %v1647 = vmul.f32 %v1610, %v1568
    %v1648 = vmul.f32 %v1611, %v1573
    %v1649 = vmul.f32 %v1612, %v1578
    %v1650 = vmul.f32 %v1613, %v1583
    %v1651 = vmul.f32 %v1614, %v1588
    %v1652 = vmul.f32 %v1615, %v1593
    %v1653 = vadd.f32 %v1637, %v1638
    %v1654 = vadd.f32 %v1653, %v1639
    %v1655 = vadd.f32 %v1654, %v1640
    %v1656 = vadd.f32 %v1655, %v1641
    %v1657 = vadd.f32 %v1656, %v1642
    %v1658 = vadd.f32 %v1657, %v1643
    %v1659 = vadd.f32 %v1658, %v1644
    %v1660 = vadd.f32 %v1659, %v1645
    %v1661 = vadd.f32 %v1660, %v1646
    %v1662 = vadd.f32 %v1661, %v1647
    %v1663 = vadd.f32 %v1662, %v1648
    %v1664 = vadd.f32 %v1663, %v1649
    %v1665 = vadd.f32 %v1664, %v1650
    %v1666 = vadd.f32 %v1665, %v1651
    %v1667 = vadd.f32 %v1666, %v1652
    %v1668 = vrot.slane %v1667, 4
    %v1669 = vadd.f32 %v1667, %v1668
    %v1670 = vrot.slane %v1669, 2
    %v1671 = vadd.f32 %v1669, %v1670
    %v1672 = vrot.slane %v1671, 1
    %v1673 = vadd.f32 %v1671, %v1672
    %v1674 = vmul.f32 %v1636, 0.0625
    %v1675 = vmul.f32 %v1673, 0.0625
    %v1676 = vmul.f32 %v1674, %v1674
    %v1677 = vsub.f32 %v1675, %v1676
    %v1678 = vmax.f32 %v1677, 0.0
    %v1679 = vadd.f32 %v1678, 1e-05
    %v1680 = vrsqrt.pop %v1679
    %v1681 = vmul.f32 %v1597, %v1680
    %v1682 = vmul.f32 %v1674, %v1681
    %v1683 = vsub.f32 %v1599, %v1682
    %v1685 = vlaneseq
    %v1686 = vshrl.u32 %v1685, 7
    %v1687 = vsub.s32 0, %v1686
    %v1688 = vrot.slane %v1681, %v1687
    %v1690 = vmul.f32 %v1518, %v1688
    %v1691 = vmul.f32 %v1523, %v1688
    %v1692 = vmul.f32 %v1528, %v1688
    %v1693 = vmul.f32 %v1533, %v1688
    %v1694 = vmul.f32 %v1538, %v1688
    %v1695 = vmul.f32 %v1543, %v1688
    %v1696 = vmul.f32 %v1548, %v1688
    %v1697 = vmul.f32 %v1553, %v1688
    %v1698 = vmul.f32 %v1558, %v1688
    %v1699 = vmul.f32 %v1563, %v1688
    %v1700 = vmul.f32 %v1568, %v1688
    %v1701 = vmul.f32 %v1573, %v1688
    %v1702 = vmul.f32 %v1578, %v1688
    %v1703 = vmul.f32 %v1583, %v1688
    %v1704 = vmul.f32 %v1588, %v1688
    %v1705 = vmul.f32 %v1593, %v1688
    %v1707 = vlaneseq
    %v1708 = vshrl.u32 %v1707, 7
    %v1709 = vsub.s32 0, %v1708
    %v1710 = vrot.slane %v1683, %v1709
    %v1712 = vadd.f32 %v1690, %v1710
    %v1713 = vadd.f32 %v1691, %v1710
    %v1714 = vadd.f32 %v1692, %v1710
    %v1715 = vadd.f32 %v1693, %v1710
    %v1716 = vadd.f32 %v1694, %v1710
    %v1717 = vadd.f32 %v1695, %v1710
    %v1718 = vadd.f32 %v1696, %v1710
    %v1719 = vadd.f32 %v1697, %v1710
    %v1720 = vadd.f32 %v1698, %v1710
    %v1721 = vadd.f32 %v1699, %v1710
    %v1722 = vadd.f32 %v1700, %v1710
    %v1723 = vadd.f32 %v1701, %v1710
    %v1724 = vadd.f32 %v1702, %v1710
    %v1725 = vadd.f32 %v1703, %v1710
    %v1726 = vadd.f32 %v1704, %v1710
    %v1727 = vadd.f32 %v1705, %v1710
    %v1728 = vmax.f32 %v1712, 0.0
    %v1729 = vmax.f32 %v1713, 0.0
    %v1730 = vmax.f32 %v1714, 0.0
    %v1731 = vmax.f32 %v1715, 0.0
    %v1732 = vmax.f32 %v1716, 0.0
    %v1733 = vmax.f32 %v1717, 0.0
    %v1734 = vmax.f32 %v1718, 0.0
    %v1735 = vmax.f32 %v1719, 0.0
    %v1736 = vmax.f32 %v1720, 0.0
    %v1737 = vmax.f32 %v1721, 0.0
    %v1738 = vmax.f32 %v1722, 0.0
    %v1739 = vmax.f32 %v1723, 0.0
    %v1740 = vmax.f32 %v1724, 0.0
    %v1741 = vmax.f32 %v1725, 0.0
    %v1742 = vmax.f32 %v1726, 0.0
    %v1743 = vmax.f32 %v1727, 0.0
    %v1744 = vmul.f32 %v1728, %v158
    %v1745 = vmul.f32 %v1729, %v159
    %v1746 = vmul.f32 %v1730, %v160
    %v1747 = vmul.f32 %v1731, %v161
    %v1748 = vmul.f32 %v1732, %v162
    %v1749 = vmul.f32 %v1733, %v163
    %v1750 = vmul.f32 %v1734, %v164
    %v1751 = vmul.f32 %v1735, %v165
    %v1752 = vmul.f32 %v1736, %v166
    %v1753 = vmul.f32 %v1737, %v167
    %v1754 = vmul.f32 %v1738, %v168
    %v1755 = vmul.f32 %v1739, %v169
    %v1756 = vmul.f32 %v1740, %v170
    %v1757 = vmul.f32 %v1741, %v171
    %v1758 = vmul.f32 %v1742, %v172
    %v1759 = vmul.f32 %v1743, %v173
    %1760 = vst [vmem:[#allocation12] sm:$0xff] %v1744
    %1761 = vst [vmem:[#allocation12 + $0x8] sm:$0xff] %v1745
    %1762 = vst [vmem:[#allocation12 + $0x10] sm:$0xff] %v1746
    %1763 = vst [vmem:[#allocation12 + $0x18] sm:$0xff] %v1747
    %1764 = vst [vmem:[#allocation12 + $0x20] sm:$0xff] %v1748
    %1765 = vst [vmem:[#allocation12 + $0x28] sm:$0xff] %v1749
    %1766 = vst [vmem:[#allocation12 + $0x30] sm:$0xff] %v1750
    %1767 = vst [vmem:[#allocation12 + $0x38] sm:$0xff] %v1751
    %1768 = vst [vmem:[#allocation12 + $0x40] sm:$0xff] %v1752
    %1769 = vst [vmem:[#allocation12 + $0x48] sm:$0xff] %v1753
    %1770 = vst [vmem:[#allocation12 + $0x50] sm:$0xff] %v1754
    %1771 = vst [vmem:[#allocation12 + $0x58] sm:$0xff] %v1755
    %1772 = vst [vmem:[#allocation12 + $0x60] sm:$0xff] %v1756
    %1773 = vst [vmem:[#allocation12 + $0x68] sm:$0xff] %v1757
    %1774 = vst [vmem:[#allocation12 + $0x70] sm:$0xff] %v1758
    %1775 = vst [vmem:[#allocation12 + $0x78] sm:$0xff] %v1759
    %v1776 = vld [vmem:[#allocation7] sm:$0xff]
    %1777 = vmatprep.subr.mxu0 0.0
    %1778 = vmatpush1.msra.mxu0 %v1744
    %1779 = vmatprep.subr.mxu0 0.0
    %1780 = vmatpush1.msra.mxu0 %v1745
    %1781 = vmatprep.subr.mxu0 0.0
    %1782 = vmatpush1.msra.mxu0 %v1746
    %1783 = vmatprep.subr.mxu0 0.0
    %1784 = vmatpush1.msra.mxu0 %v1747
    %1785 = vmatprep.subr.mxu0 0.0
    %1786 = vmatpush1.msra.mxu0 %v1748
    %1787 = vmatprep.subr.mxu0 0.0
    %1788 = vmatpush1.msra.mxu0 %v1749
    %1789 = vmatprep.subr.mxu0 0.0
    %1790 = vmatpush1.msra.mxu0 %v1750
    %1791 = vmatprep.subr.mxu0 0.0
    %1792 = vmatpush1.msra.mxu0 %v1751
    %1793 = vmatprep.subr.mxu0 0.0
    %1794 = vmatpush1.msra.mxu0 %v1752
    %1795 = vmatprep.subr.mxu0 0.0
    %1796 = vmatpush1.msra.mxu0 %v1753
    %1797 = vmatprep.subr.mxu0 0.0
    %1798 = vmatpush1.msra.mxu0 %v1754
    %1799 = vmatprep.subr.mxu0 0.0
    %1800 = vmatpush1.msra.mxu0 %v1755
    %1801 = vmatprep.subr.mxu0 0.0
    %1802 = vmatpush1.msra.mxu0 %v1756
    %1803 = vmatprep.subr.mxu0 0.0
    %1804 = vmatpush1.msra.mxu0 %v1757
    %1805 = vmatprep.subr.mxu0 0.0
    %1806 = vmatpush1.msra.mxu0 %v1758
    %1807 = vmatprep.subr.mxu0 0.0
    %1808 = vmatpush1.msra.mxu0 %v1759
    %1809 = vmatprep.subr.mxu0 0.0
    %1810 = vmatpush1.msra.mxu0 0.0
    %1811 = vmatprep.subr.mxu0 0.0
    %1812 = vmatpush1.msra.mxu0 0.0
    %1813 = vmatprep.subr.mxu0 0.0
    %1814 = vmatpush1.msra.mxu0 0.0
    %1815 = vmatprep.subr.mxu0 0.0
    %1816 = vmatpush1.msra.mxu0 0.0
    %1817 = vmatprep.subr.mxu0 0.0
    %1818 = vmatpush1.msra.mxu0 0.0
    %1819 = vmatprep.subr.mxu0 0.0
    %1820 = vmatpush1.msra.mxu0 0.0
    %1821 = vmatprep.subr.mxu0 0.0
    %1822 = vmatpush1.msra.mxu0 0.0
    %1823 = vmatprep.subr.mxu0 0.0
    %1824 = vmatpush1.msra.mxu0 0.0
    %1825 = vmatprep.subr.mxu0 0.0
    %1826 = vmatpush1.msra.mxu0 0.0
    %1827 = vmatprep.subr.mxu0 0.0
    %1828 = vmatpush1.msra.mxu0 0.0
    %1829 = vmatprep.subr.mxu0 0.0
    %1830 = vmatpush1.msra.mxu0 0.0
    %1831 = vmatprep.subr.mxu0 0.0
    %1832 = vmatpush1.msra.mxu0 0.0
    %1833 = vmatprep.subr.mxu0 0.0
    %1834 = vmatpush1.msra.mxu0 0.0
    %1835 = vmatprep.subr.mxu0 0.0
    %1836 = vmatpush1.msra.mxu0 0.0
    %1837 = vmatprep.subr.mxu0 0.0
    %1838 = vmatpush1.msra.mxu0 0.0
    %1839 = vmatprep.subr.mxu0 0.0
    %1840 = vmatpush1.msra.mxu0 0.0
    %1841 = vmatprep.mubr.f32.mxu0 0.0
    %1842 = vmatmul.mubr.f32.gmra.mrb[0].mxu0 %v1776
    %v1843 = vpop.f32.mrb[0].mxu0
    %v1844 = vadd.f32 0.0, %v1843
    %v1845 = vpop.f32.mrb[0].mxu0
    %1846 = vdwg.mxu0
    %1847 = vst [vmem:[#allocation11] sm:$0xff] %v1844
    // Predicated region
    $region66: #{tpu_custom_call.1} parent=1 // pred_check
      _
    $region67: #{tpu_custom_call.1} parent=1 // pred_check_branch
      %1849 = sbr.rel (0) target = $region69
    $region68: #{tpu_custom_call.1} parent=1 // pred_region
      %s1851 = ssub.s32 128, 128
      %1852 = vsyncadd [#allocation4], %s1851
      %s1854 = sshll.u32 [#allocation11], 4
      %s1855 = int_to_ptr.vmem [resolvable:$true] %s1854
      %1857 = dma.vmem_to_hbm [thread:$0]  %s1855, 128, %s11, [#allocation4]
    $region69: #{tpu_custom_call.1} parent=1 // pred_fallthru
      _
    // Predicated region
    $region70: #{tpu_custom_call.1} parent=1 // pred_check
      _
    $region71: #{tpu_custom_call.1} parent=1 // pred_check_branch
      %1859 = sbr.rel (0) target = $region73
    $region72: #{tpu_custom_call.1} parent=1 // pred_region
      %s1861 = ssub.s32 2048, 2048
      %1862 = vsyncadd [#allocation13], %s1861
      %s1863 = sshll.u32 [#allocation12], 4
      %s1864 = int_to_ptr.vmem [resolvable:$true] %s1863
      %1869 = dma.vmem_to_hbm [thread:$0]  %s1864, 2048, %s12, [#allocation13], 128, 128, 8
    $region73: #{tpu_custom_call.1} parent=1 // pred_fallthru
      _
    // Predicated region
    $region74: #{tpu_custom_call.1} parent=1 // pred_check
      _
    $region75: #{tpu_custom_call.1} parent=1 // pred_check_branch
      %1871 = sbr.rel (0) target = $region77
    $region76: #{tpu_custom_call.1} parent=1 // pred_region
      %1872 = dma.done [#allocation4], 128
    $region77: #{tpu_custom_call.1} parent=1 // pred_fallthru
      _
    // Predicated region
    $region78: #{tpu_custom_call.1} parent=1 // pred_check
      _
    $region79: #{tpu_custom_call.1} parent=1 // pred_check_branch
      %1874 = sbr.rel (0) target = $region81
    $region80: #{tpu_custom_call.1} parent=1 // pred_region
      %1875 = dma.done [#allocation13], 2048
    $region81: #{tpu_custom_call.1} parent=1 // pred_fallthru
      _
    %1876 = vsyncpa [#allocation3], 1
    %1877 = vsyncpa [#allocation6], 1
    %1878 = vsyncpa [#allocation9], 1
    %1879 = vsyncpa [#allocation4], 1
    %1880 = vsyncpa [#allocation13], 1

</llo_original>
